<compile_context>
chip_gen: v6e
topology: v6e:2x2x1
jax: 0.10.0
libtpu: 0.0.40
codegen_flags: <defaults>
</compile_context>

<pallas_src>
import jax
import jax.numpy as jnp
from jax import lax
from jax.experimental import pallas as pl
from jax.experimental.pallas import tpu as pltpu


def _round_up(x, m):
    return (x + m - 1) // m * m


def _chip_info():
    """(vmem_capacity_bytes, is_v7, mxu_rows) with conservative fallbacks."""
    kind = ""
    try:
        kind = jax.devices()[0].device_kind.lower()
    except Exception:
        pass
    try:
        vmem_cap = int(pltpu.get_tpu_info().vmem_capacity_bytes)
    except Exception:
        vmem_cap = 64 << 20                       # conservative (v7x-sized) fallback
    is_v7 = "v7" in kind
    mxu_rows = 256 if ("v6" in kind or "v7" in kind) else 128
    return vmem_cap, is_v7, mxu_rows


# ---------------------------------------------------------------------------
# Fused GRU kernel: chunk input-projection GEMM + recurrence + fc/sigmoid head.
#   grid = (B_pad // BT ["parallel"],  T_pad // TC ["arbitrary"])
# ---------------------------------------------------------------------------
def gru_fused_kernel(nchunks_ref,   # (n_btiles,) int32 SMEM (prefetch): chunks needed per batch tile
                     cidx_ref,      # (n_btiles, n_chunks) int32 SMEM (prefetch): clamped x block index
                     lens_ref,      # (BT, 1) int32 VMEM: per-row lengths (mask)
                     x_ref,         # (TC, BT, E_pad) compute dtype: streamed raw embedded chunk
                     wi_ref,        # (E_pad, 3*H_pad) compute dtype, resident fused input weight
                     bi_ref,        # (1, 3*H_pad) f32: input biases with b_hr/b_hz folded in
                     wh_ref,        # (H_pad, 3*H_pad) compute dtype, resident fused hidden weight
                     bhn_ref,       # (1, H_pad) f32: n-gate hidden bias (must stay hidden-side)
                     wfc_ref,       # (H_pad, 128) compute dtype, real weight in column 0
                     bfc_ref,       # (1, 128) f32
                     out_ref,       # (BT, 128) f32, lane-dense output block
                     h_ref,         # scratch (BT, H_pad) f32, persists across the time grid axis
                     xp_ref):       # scratch (TC, BT, 3*H_pad) f32, per-chunk projection
    del cidx_ref                    # consumed only by the x BlockSpec index_map
    b_idx = pl.program_id(0)
    t_idx = pl.program_id(1)
    TC, BT, E = x_ref.shape
    H = wh_ref.shape[0]

    @pl.when(t_idx == 0)
    def _init():
        h_ref[...] = jnp.zeros_like(h_ref)

    # Skip pure-padding chunks entirely (their DMA is already elided by the clamped index_map).
    @pl.when(t_idx < nchunks_ref[b_idx])
    def _compute():
        lens = lens_ref[...]                                      # (BT, 1) int32
        wh = wh_ref[...]                                          # (H, 3H)
        bhn = bhn_ref[...]                                        # (1, H) implicit broadcast

        # Hoisted, h-independent chunk projection: ONE big MXU GEMM covering all TC steps,
        # issued ahead of the serial per-step recurrence matmuls.
        xw = jnp.dot(x_ref[...].reshape(TC * BT, E), wi_ref[...],
                     preferred_element_type=jnp.float32)          # (TC*BT, 3H) f32
        xp_ref[...] = (xw + bi_ref[...]).reshape(TC, BT, 3 * H)

        chunk_start = t_idx * TC

        def step(tt, h):
            xp = xp_ref[tt]                                       # (BT, 3H) f32
            hh = jnp.dot(h.astype(wh.dtype), wh,
                         preferred_element_type=jnp.float32)      # (BT, 3H): 1 MXU op / step
            r = jax.nn.sigmoid(xp[:, :H] + hh[:, :H])
            z = jax.nn.sigmoid(xp[:, H:2 * H] + hh[:, H:2 * H])
            n = jnp.tanh(xp[:, 2 * H:] + r * (hh[:, 2 * H:] + bhn))
            h_new = n + z * (h - n)
            # packed-sequence semantics: only advance hidden while t < length[b]
            return jnp.where((chunk_start + tt) < lens, h_new, h)

        h_ref[...] = lax.fori_loop(0, TC, step, h_ref[...], unroll=True)

    @pl.when(t_idx == pl.num_programs(1) - 1)
    def _head():
        h = h_ref[...]
        logits = jnp.dot(h.astype(wfc_ref.dtype), wfc_ref[...],
                         preferred_element_type=jnp.float32) + bfc_ref[...]
        out_ref[...] = jax.nn.sigmoid(logits)                     # (BT, 128) lane-dense store


# ---------------------------------------------------------------------------
# Params (PyTorch-style per-gate layout; fusion/padding happens in the wrapper)
# ---------------------------------------------------------------------------
def make_params(key, vocab_size, embedding_dim, hidden_dim):
    ks = jax.random.split(key, 16)
    s = 1.0 / jnp.sqrt(hidden_dim)
    u = lambda k, shape: jax.random.uniform(k, shape, jnp.float32, -s, s)
    return {
        "emb": jax.random.normal(ks[0], (vocab_size, embedding_dim), jnp.float32),
        "wir": u(ks[1], (embedding_dim, hidden_dim)),
        "wiz": u(ks[2], (embedding_dim, hidden_dim)),
        "win": u(ks[3], (embedding_dim, hidden_dim)),
        "whr": u(ks[4], (hidden_dim, hidden_dim)),
        "whz": u(ks[5], (hidden_dim, hidden_dim)),
        "whn": u(ks[6], (hidden_dim, hidden_dim)),
        "bir": u(ks[7], (1, hidden_dim)),
        "biz": u(ks[8], (1, hidden_dim)),
        "bin": u(ks[9], (1, hidden_dim)),
        "bhr": u(ks[10], (1, hidden_dim)),
        "bhz": u(ks[11], (1, hidden_dim)),
        "bhn": u(ks[12], (1, hidden_dim)),
        "wfc": u(ks[13], (hidden_dim, 1)),
        "bfc": jnp.zeros((1, 1), jnp.float32),
    }


# ---------------------------------------------------------------------------
# Forward wrapper (glue: embedding gather, padding, weight fusion, one pallas_call)
# ---------------------------------------------------------------------------
def rnn_forward(x, x_len, params, *, compute_dtype=jnp.bfloat16):
    """x: (T, B) int32 token ids (seq-major); x_len: (B,) valid lengths."""
    T, B = x.shape
    E = params["wir"].shape[0]
    H = params["whr"].shape[0]

    LANE, SUB = 128, 8
    H_pad = _round_up(H, LANE)
    E_pad = _round_up(E, LANE)
    csize = jnp.dtype(compute_dtype).itemsize

    vmem_cap, is_v7, mxu_rows = _chip_info()
    vmem_budget = int(0.85 * vmem_cap)            # leave headroom for Mosaic internal scratch

    # ---- batch tile: fill the MXU rows; on v7x split small batches across both TCs ----
    if B <= SUB:
        BT = SUB
    elif is_v7:
        BT = min(mxu_rows, _round_up(-(-B // 2), SUB))    # >=2 "parallel" tiles
    else:
        BT = min(mxu_rows, _round_up(B, SUB))

    # ---- time chunk: biggest TC whose VMEM footprint fits; shrink BT if even TC=8 won't ----
    def footprint(tc, bt):
        return (2 * tc * bt * E_pad * csize            # streamed raw X chunks (double-buffered)
                + tc * bt * 3 * H_pad * 4              # per-chunk projection scratch (f32)
                + E_pad * 3 * H_pad * csize            # resident Wi
                + H_pad * 3 * H_pad * csize            # resident Wh
                + H_pad * LANE * csize                 # fc weight
                + (3 * H_pad + H_pad + 2 * LANE) * 4   # biases
                + bt * H_pad * 4                       # h scratch
                + 2 * bt * LANE * 4                    # output block
                + 2 * bt * 4)                          # lens

    def pick_tc(bt):
        for tc in ((16, 8) if is_v7 else (32, 16, 8)):
            if footprint(tc, bt) <= 0.7 * vmem_budget:
                return tc
        return 8

    TC = pick_tc(BT)
    while footprint(TC, BT) > 0.9 * vmem_budget and BT > SUB:
        BT = max(SUB, _round_up(BT // 2, SUB))
        TC = pick_tc(BT)
    TC = min(TC, _round_up(max(T, 1), SUB))            # don't over-chunk short sequences

    B_pad = _round_up(B, BT)
    n_btiles = B_pad // BT
    T_pad = _round_up(T, TC)
    n_chunks = T_pad // TC

    def pad2(a, r, c):
        return jnp.zeros((r, c), a.dtype).at[:a.shape[0], :a.shape[1]].set(a)

    # Fuse the three gate weights (r|z|n), padding each gate block to H_pad so the in-kernel
    # lane slices stay aligned with gate boundaries.  Padded entries MUST be zero (inertness).
    wi = jnp.concatenate([pad2(params["wir"], E_pad, H_pad),
                          pad2(params["wiz"], E_pad, H_pad),
                          pad2(params["win"], E_pad, H_pad)], axis=1).astype(compute_dtype)
    wh = jnp.concatenate([pad2(params["whr"], H_pad, H_pad),
                          pad2(params["whz"], H_pad, H_pad),
                          pad2(params["whn"], H_pad, H_pad)], axis=1).astype(compute_dtype)
    # Fold b_ir+b_hr and b_iz+b_hz into the projection bias; b_hn stays hidden-side (r * (...)).
    bi = jnp.concatenate([pad2(params["bir"] + params["bhr"], 1, H_pad),
                          pad2(params["biz"] + params["bhz"], 1, H_pad),
                          pad2(params["bin"], 1, H_pad)], axis=1).astype(jnp.float32)
    bhn = pad2(params["bhn"], 1, H_pad).astype(jnp.float32)
    wfc = pad2(params["wfc"], H_pad, LANE).astype(compute_dtype)   # real weight in column 0
    bfc = pad2(params["bfc"], 1, LANE).astype(jnp.float32)

    # Embedding gather directly into the padded (T_pad, B_pad, E_pad) compute-dtype layout.
    # TODO(synk): the row gather itself stays in XLA glue (data-dependent gather; a Pallas
    # version would need a manual-DMA gather kernel).
    emb_tbl = params["emb"]
    if E_pad != E:
        emb_tbl = jnp.pad(emb_tbl, ((0, 0), (0, E_pad - E)))
    emb_tbl = emb_tbl.astype(compute_dtype)
    ids = jnp.zeros((T_pad, B_pad), jnp.int32).at[:T, :B].set(x.astype(jnp.int32))
    x_emb = emb_tbl[ids]                                           # (T_pad, B_pad, E_pad)

    # Lengths: per-row vector mask + per-tile chunk counts (real max -> no sortedness needed)
    # + clamped time-block index table so trailing padding chunks reuse the previous DMA.
    lens_pad = jnp.zeros((B_pad,), jnp.int32).at[:B].set(x_len.astype(jnp.int32))
    lens_v = lens_pad.reshape(B_pad, 1)
    tile_max = jnp.max(lens_pad.reshape(n_btiles, BT), axis=1)
    nchunks = ((tile_max + TC - 1) // TC).astype(jnp.int32)        # (n_btiles,)
    t_iota = jnp.arange(n_chunks, dtype=jnp.int32)[None, :]
    chunk_idx = jnp.minimum(t_iota, jnp.maximum(nchunks[:, None] - 1, 0)).astype(jnp.int32)

    fp = footprint(TC, BT)
    vmem_limit = int(min(vmem_budget, max(int(1.5 * fp) + (4 << 20), 32 << 20)))

    grid_spec = pltpu.PrefetchScalarGridSpec(
        num_scalar_prefetch=2,
        grid=(n_btiles, n_chunks),
        in_specs=[
            pl.BlockSpec((BT, 1), lambda b, t, nck, cidx: (b, 0)),             # lens (mask)
            pl.BlockSpec((TC, BT, E_pad),
                         lambda b, t, nck, cidx: (cidx[b, t], b, 0)),          # streamed raw X
            pl.BlockSpec((E_pad, 3 * H_pad), lambda b, t, nck, cidx: (0, 0)),  # Wi (resident)
            pl.BlockSpec((1, 3 * H_pad), lambda b, t, nck, cidx: (0, 0)),      # folded input bias
            pl.BlockSpec((H_pad, 3 * H_pad), lambda b, t, nck, cidx: (0, 0)),  # Wh (resident)
            pl.BlockSpec((1, H_pad), lambda b, t, nck, cidx: (0, 0)),          # b_hn
            pl.BlockSpec((H_pad, LANE), lambda b, t, nck, cidx: (0, 0)),       # W_fc (lane-padded)
            pl.BlockSpec((1, LANE), lambda b, t, nck, cidx: (0, 0)),           # b_fc
        ],
        out_specs=pl.BlockSpec((BT, LANE), lambda b, t, nck, cidx: (b, 0)),
        scratch_shapes=[pltpu.VMEM((BT, H_pad), jnp.float32),                  # h state
                        pltpu.VMEM((TC, BT, 3 * H_pad), jnp.float32)],         # chunk projection
    )

    out = pl.pallas_call(
        gru_fused_kernel,
        out_shape=jax.ShapeDtypeStruct((B_pad, LANE), jnp.float32),
        grid_spec=grid_spec,
        compiler_params=pltpu.CompilerParams(
            dimension_semantics=("parallel", "arbitrary"),
            vmem_limit_bytes=vmem_limit),
    )(nchunks, chunk_idx, lens_v, x_emb, wi, bi, wh, bhn, wfc, bfc)

    return out[:B, 0]                                              # (B,)


# ---------------------------------------------------------------------------
# Pure-JAX f32 reference with identical semantics (correctness self-check)
# ---------------------------------------------------------------------------
def rnn_forward_ref(x, x_len, params):
    emb = params["emb"][x]
    T, B, _ = emb.shape
    H = params["whr"].shape[0]
    lens = x_len.reshape(B, 1)

    def step(h, inp):
        x_t, t = inp
        r = jax.nn.sigmoid(x_t @ params["wir"] + params["bir"] + h @ params["whr"] + params["bhr"])
        z = jax.nn.sigmoid(x_t @ params["wiz"] + params["biz"] + h @ params["whz"] + params["bhz"])
        n = jnp.tanh(x_t @ params["win"] + params["bin"] + r * (h @ params["whn"] + params["bhn"]))
        h_new = (1.0 - z) * n + z * h
        return jnp.where(t < lens, h_new, h), None

    h0 = jnp.zeros((B, H), jnp.float32)
    h_final, _ = lax.scan(step, h0, (emb, jnp.arange(T)))
    return jax.nn.sigmoid(h_final @ params["wfc"] + params["bfc"]).flatten()


if __name__ == "__main__":
    VOCAB, E, H = 50, 32, 32
    T, B = 8, 4

    key = jax.random.PRNGKey(0)
    kp, kx = jax.random.split(key)
    params = make_params(kp, VOCAB, E, H)

    x = jax.random.randint(kx, (T, B), 0, VOCAB, dtype=jnp.int32)    # (seq, batch)
    x_len = jnp.array([8, 6, 5, 3], dtype=jnp.int32)                 # pack_padded_sequence lengths

    ref = rnn_forward_ref(x, x_len, params)

    # f32 compute path: tight check against the reference.
    out_f32 = rnn_forward(x, x_len, params, compute_dtype=jnp.float32)
    jax.block_until_ready(out_f32)
    assert out_f32.shape == (B,)
    assert jnp.allclose(out_f32, ref, atol=1e-2, rtol=1e-2), (out_f32, ref)

    # bf16 compute path (the performance configuration): looser tolerance.
    out_bf16 = rnn_forward(x, x_len, params, compute_dtype=jnp.bfloat16)
    jax.block_until_ready(out_bf16)
    assert out_bf16.shape == (B,)
    assert jnp.allclose(out_bf16, ref, atol=5e-2, rtol=0.0), (out_bf16, ref)

    print("KERNEL_OK")
</pallas_src>

<mosaic_0001>
module attributes {stable_mosaic.version = 11 : i64} {
  func.func @gru_fused_kernel(%arg0: i32, %arg1: i32, %arg2: memref<1xi32, #tpu.memory_space<smem>>, %arg3: memref<1x1xi32, #tpu.memory_space<smem>>, %arg4: memref<8x1xi32, #tpu.memory_space<vmem>>, %arg5: memref<8x8x128xf32, #tpu.memory_space<vmem>>, %arg6: memref<128x384xf32, #tpu.memory_space<vmem>>, %arg7: memref<1x384xf32, #tpu.memory_space<vmem>>, %arg8: memref<128x384xf32, #tpu.memory_space<vmem>>, %arg9: memref<1x128xf32, #tpu.memory_space<vmem>>, %arg10: memref<128x128xf32, #tpu.memory_space<vmem>>, %arg11: memref<1x128xf32, #tpu.memory_space<vmem>>, %arg12: memref<8x128xf32, #tpu.memory_space<vmem>>, %arg13: memref<8x128xf32, #tpu.memory_space<vmem>>, %arg14: memref<8x8x384xf32, #tpu.memory_space<vmem>>) attributes {dimension_semantics = [#tpu.dimension_semantics<parallel>, #tpu.dimension_semantics<arbitrary>], iteration_bounds = array<i64: 1, 1>, scalar_prefetch = 2 : i64, scratch_operands = 2 : i64, tpu.core_type = #tpu.core_type<tc>, window_params = [{transform_indices = @transform_0, window_bounds = array<i64: 8, 1>}, {transform_indices = @transform_1, window_bounds = array<i64: 8, 8, 128>}, {pipeline_mode = #tpu.pipeline_mode<synchronous>, transform_indices = @transform_2, window_bounds = array<i64: 128, 384>}, {pipeline_mode = #tpu.pipeline_mode<synchronous>, transform_indices = @transform_3, window_bounds = array<i64: 1, 384>}, {pipeline_mode = #tpu.pipeline_mode<synchronous>, transform_indices = @transform_4, window_bounds = array<i64: 128, 384>}, {pipeline_mode = #tpu.pipeline_mode<synchronous>, transform_indices = @transform_5, window_bounds = array<i64: 1, 128>}, {pipeline_mode = #tpu.pipeline_mode<synchronous>, transform_indices = @transform_6, window_bounds = array<i64: 128, 128>}, {pipeline_mode = #tpu.pipeline_mode<synchronous>, transform_indices = @transform_7, window_bounds = array<i64: 1, 128>}, {transform_indices = @transform_8, window_bounds = array<i64: 8, 128>}]} {
    %c0_i32 = arith.constant 0 : i32
    %0 = arith.cmpi eq, %arg1, %c0_i32 : i32
    %1 = arith.extui %0 : i1 to i32
    %c0_i32_0 = arith.constant 0 : i32
    %2 = arith.cmpi ne, %1, %c0_i32_0 : i32
    scf.if %2 {
      %cst = arith.constant 0.000000e+00 : f32
      %11 = vector.broadcast %cst : f32 to vector<8x128xf32>
      %c0 = arith.constant 0 : index
      %c0_4 = arith.constant 0 : index
      %12 = vector.load %arg13[%c0, %c0_4] : memref<8x128xf32, #tpu.memory_space<vmem>>, vector<8x128xf32>
      tpu.vector_store %arg13[%c0, %c0_4], %11 {strides = array<i32>} : memref<8x128xf32, #tpu.memory_space<vmem>>, vector<8x128xf32>,
    } else {
    }
    %3 = arith.index_cast %arg0 : i32 to index
    %4 = memref.load %arg2[%3] : memref<1xi32, #tpu.memory_space<smem>>
    %5 = arith.cmpi slt, %arg1, %4 : i32
    %6 = arith.extui %5 : i1 to i32
    %c0_i32_1 = arith.constant 0 : i32
    %7 = arith.cmpi ne, %6, %c0_i32_1 : i32
    scf.if %7 {
      %c0 = arith.constant 0 : index
      %c0_4 = arith.constant 0 : index
      %11 = vector.load %arg4[%c0, %c0_4] : memref<8x1xi32, #tpu.memory_space<vmem>>, vector<8x1xi32>
      %c0_5 = arith.constant 0 : index
      %c0_6 = arith.constant 0 : index
      %12 = vector.load %arg8[%c0_5, %c0_6] : memref<128x384xf32, #tpu.memory_space<vmem>>, vector<128x384xf32>
      %c0_7 = arith.constant 0 : index
      %c0_8 = arith.constant 0 : index
      %13 = vector.load %arg9[%c0_7, %c0_8] : memref<1x128xf32, #tpu.memory_space<vmem>>, vector<1x128xf32>
      %c0_9 = arith.constant 0 : index
      %c0_10 = arith.constant 0 : index
      %c0_11 = arith.constant 0 : index
      %14 = vector.load %arg5[%c0_9, %c0_10, %c0_11] : memref<8x8x128xf32, #tpu.memory_space<vmem>>, vector<8x8x128xf32>
      %15 = vector.shape_cast %14 : vector<8x8x128xf32> to vector<64x128xf32>
      %c0_12 = arith.constant 0 : index
      %c0_13 = arith.constant 0 : index
      %16 = vector.load %arg6[%c0_12, %c0_13] : memref<128x384xf32, #tpu.memory_space<vmem>>, vector<128x384xf32>
      %cst = arith.constant dense<0.000000e+00> : vector<64x384xf32>
      %17 = tpu.matmul %15, %16, %cst {dimension_numbers = #tpu.dot_dimension_numbers<[1], [0], [0], [1], [0, 0, 1, 1], [], []>} : vector<64x128xf32>, vector<128x384xf32>, vector<64x384xf32> -> vector<64x384xf32>
      %c0_14 = arith.constant 0 : index
      %c0_15 = arith.constant 0 : index
      %18 = vector.load %arg7[%c0_14, %c0_15] : memref<1x384xf32, #tpu.memory_space<vmem>>, vector<1x384xf32>
      %19 = vector.broadcast %18 : vector<1x384xf32> to vector<64x384xf32>
      %20 = arith.addf %17, %19 : vector<64x384xf32>
      %21 = vector.shape_cast %20 : vector<64x384xf32> to vector<8x8x384xf32>
      %c0_16 = arith.constant 0 : index
      %c0_17 = arith.constant 0 : index
      %c0_18 = arith.constant 0 : index
      %22 = vector.load %arg14[%c0_16, %c0_17, %c0_18] : memref<8x8x384xf32, #tpu.memory_space<vmem>>, vector<8x8x384xf32>
      tpu.vector_store %arg14[%c0_16, %c0_17, %c0_18], %21 {strides = array<i32>} : memref<8x8x384xf32, #tpu.memory_space<vmem>>, vector<8x8x384xf32>,
      %c8_i32 = arith.constant 8 : i32
      %23 = arith.muli %arg1, %c8_i32 : i32
      %c0_19 = arith.constant 0 : index
      %c0_20 = arith.constant 0 : index
      %24 = vector.load %arg13[%c0_19, %c0_20] : memref<8x128xf32, #tpu.memory_space<vmem>>, vector<8x128xf32>
      %c0_i32_21 = arith.constant 0 : i32
      %25 = arith.index_cast %c0_i32_21 : i32 to index
      %c0_22 = arith.constant 0 : index
      %c0_23 = arith.constant 0 : index
      %26 = vector.load %arg14[%25, %c0_22, %c0_23] : memref<8x8x384xf32, #tpu.memory_space<vmem>>, vector<1x8x384xf32>
      %27 = vector.shape_cast %26 : vector<1x8x384xf32> to vector<8x384xf32>
      %cst_24 = arith.constant dense<0.000000e+00> : vector<8x384xf32>
      %28 = tpu.matmul %24, %12, %cst_24 {dimension_numbers = #tpu.dot_dimension_numbers<[1], [0], [0], [1], [0, 0, 1, 1], [], []>} : vector<8x128xf32>, vector<128x384xf32>, vector<8x384xf32> -> vector<8x384xf32>
      %29 = vector.extract_strided_slice %27 {offsets = [0, 0], sizes = [8, 128], strides = [1, 1]} : vector<8x384xf32> to vector<8x128xf32>
      %30 = vector.extract_strided_slice %28 {offsets = [0, 0], sizes = [8, 128], strides = [1, 1]} : vector<8x384xf32> to vector<8x128xf32>
      %31 = arith.addf %29, %30 : vector<8x128xf32>
      %32 = arith.negf %31 : vector<8x128xf32>
      %33 = math.exp %32 : vector<8x128xf32>
      %cst_25 = arith.constant 1.000000e+00 : f32
      %34 = vector.broadcast %cst_25 : f32 to vector<8x128xf32>
      %35 = arith.addf %34, %33 : vector<8x128xf32>
      %36 = arith.divf %34, %35 : vector<8x128xf32>
      %37 = vector.extract_strided_slice %27 {offsets = [0, 128], sizes = [8, 128], strides = [1, 1]} : vector<8x384xf32> to vector<8x128xf32>
      %38 = vector.extract_strided_slice %28 {offsets = [0, 128], sizes = [8, 128], strides = [1, 1]} : vector<8x384xf32> to vector<8x128xf32>
      %39 = arith.addf %37, %38 : vector<8x128xf32>
      %40 = arith.negf %39 : vector<8x128xf32>
      %41 = math.exp %40 : vector<8x128xf32>
      %cst_26 = arith.constant 1.000000e+00 : f32
      %42 = vector.broadcast %cst_26 : f32 to vector<8x128xf32>
      %43 = arith.addf %42, %41 : vector<8x128xf32>
      %44 = arith.divf %42, %43 : vector<8x128xf32>
      %45 = vector.extract_strided_slice %27 {offsets = [0, 256], sizes = [8, 128], strides = [1, 1]} : vector<8x384xf32> to vector<8x128xf32>
      %46 = vector.extract_strided_slice %28 {offsets = [0, 256], sizes = [8, 128], strides = [1, 1]} : vector<8x384xf32> to vector<8x128xf32>
      %47 = vector.broadcast %13 : vector<1x128xf32> to vector<8x128xf32>
      %48 = arith.addf %46, %47 : vector<8x128xf32>
      %49 = arith.mulf %36, %48 : vector<8x128xf32>
      %50 = arith.addf %45, %49 : vector<8x128xf32>
      %51 = math.tanh %50 : vector<8x128xf32>
      %52 = arith.subf %24, %51 : vector<8x128xf32>
      %53 = arith.mulf %44, %52 : vector<8x128xf32>
      %54 = arith.addf %51, %53 : vector<8x128xf32>
      %55 = arith.addi %23, %c0_i32_21 : i32
      %56 = vector.broadcast %55 : i32 to vector<8x1xi32>
      %57 = arith.cmpi slt, %56, %11 : vector<8x1xi32>
      %58 = vector.shape_cast %57 : vector<8x1xi1> to vector<8x1xi1>
      %59 = vector.broadcast %58 : vector<8x1xi1> to vector<8x128xi1>
      %60 = arith.select %59, %54, %24 : vector<8x128xi1>, vector<8x128xf32>
      %c1_i32 = arith.constant 1 : i32
      %61 = arith.index_cast %c1_i32 : i32 to index
      %c0_27 = arith.constant 0 : index
      %c0_28 = arith.constant 0 : index
      %62 = vector.load %arg14[%61, %c0_27, %c0_28] : memref<8x8x384xf32, #tpu.memory_space<vmem>>, vector<1x8x384xf32>
      %63 = vector.shape_cast %62 : vector<1x8x384xf32> to vector<8x384xf32>
      %cst_29 = arith.constant dense<0.000000e+00> : vector<8x384xf32>
      %64 = tpu.matmul %60, %12, %cst_29 {dimension_numbers = #tpu.dot_dimension_numbers<[1], [0], [0], [1], [0, 0, 1, 1], [], []>} : vector<8x128xf32>, vector<128x384xf32>, vector<8x384xf32> -> vector<8x384xf32>
      %65 = vector.extract_strided_slice %63 {offsets = [0, 0], sizes = [8, 128], strides = [1, 1]} : vector<8x384xf32> to vector<8x128xf32>
      %66 = vector.extract_strided_slice %64 {offsets = [0, 0], sizes = [8, 128], strides = [1, 1]} : vector<8x384xf32> to vector<8x128xf32>
      %67 = arith.addf %65, %66 : vector<8x128xf32>
      %68 = arith.negf %67 : vector<8x128xf32>
      %69 = math.exp %68 : vector<8x128xf32>
      %cst_30 = arith.constant 1.000000e+00 : f32
      %70 = vector.broadcast %cst_30 : f32 to vector<8x128xf32>
      %71 = arith.addf %70, %69 : vector<8x128xf32>
      %72 = arith.divf %70, %71 : vector<8x128xf32>
      %73 = vector.extract_strided_slice %63 {offsets = [0, 128], sizes = [8, 128], strides = [1, 1]} : vector<8x384xf32> to vector<8x128xf32>
      %74 = vector.extract_strided_slice %64 {offsets = [0, 128], sizes = [8, 128], strides = [1, 1]} : vector<8x384xf32> to vector<8x128xf32>
      %75 = arith.addf %73, %74 : vector<8x128xf32>
      %76 = arith.negf %75 : vector<8x128xf32>
      %77 = math.exp %76 : vector<8x128xf32>
      %cst_31 = arith.constant 1.000000e+00 : f32
      %78 = vector.broadcast %cst_31 : f32 to vector<8x128xf32>
      %79 = arith.addf %78, %77 : vector<8x128xf32>
      %80 = arith.divf %78, %79 : vector<8x128xf32>
      %81 = vector.extract_strided_slice %63 {offsets = [0, 256], sizes = [8, 128], strides = [1, 1]} : vector<8x384xf32> to vector<8x128xf32>
      %82 = vector.extract_strided_slice %64 {offsets = [0, 256], sizes = [8, 128], strides = [1, 1]} : vector<8x384xf32> to vector<8x128xf32>
      %83 = vector.broadcast %13 : vector<1x128xf32> to vector<8x128xf32>
      %84 = arith.addf %82, %83 : vector<8x128xf32>
      %85 = arith.mulf %72, %84 : vector<8x128xf32>
      %86 = arith.addf %81, %85 : vector<8x128xf32>
      %87 = math.tanh %86 : vector<8x128xf32>
      %88 = arith.subf %60, %87 : vector<8x128xf32>
      %89 = arith.mulf %80, %88 : vector<8x128xf32>
      %90 = arith.addf %87, %89 : vector<8x128xf32>
      %91 = arith.addi %23, %c1_i32 : i32
      %92 = vector.broadcast %91 : i32 to vector<8x1xi32>
      %93 = arith.cmpi slt, %92, %11 : vector<8x1xi32>
      %94 = vector.shape_cast %93 : vector<8x1xi1> to vector<8x1xi1>
      %95 = vector.broadcast %94 : vector<8x1xi1> to vector<8x128xi1>
      %96 = arith.select %95, %90, %60 : vector<8x128xi1>, vector<8x128xf32>
      %c2_i32 = arith.constant 2 : i32
      %97 = arith.index_cast %c2_i32 : i32 to index
      %c0_32 = arith.constant 0 : index
      %c0_33 = arith.constant 0 : index
      %98 = vector.load %arg14[%97, %c0_32, %c0_33] : memref<8x8x384xf32, #tpu.memory_space<vmem>>, vector<1x8x384xf32>
      %99 = vector.shape_cast %98 : vector<1x8x384xf32> to vector<8x384xf32>
      %cst_34 = arith.constant dense<0.000000e+00> : vector<8x384xf32>
      %100 = tpu.matmul %96, %12, %cst_34 {dimension_numbers = #tpu.dot_dimension_numbers<[1], [0], [0], [1], [0, 0, 1, 1], [], []>} : vector<8x128xf32>, vector<128x384xf32>, vector<8x384xf32> -> vector<8x384xf32>
      %101 = vector.extract_strided_slice %99 {offsets = [0, 0], sizes = [8, 128], strides = [1, 1]} : vector<8x384xf32> to vector<8x128xf32>
      %102 = vector.extract_strided_slice %100 {offsets = [0, 0], sizes = [8, 128], strides = [1, 1]} : vector<8x384xf32> to vector<8x128xf32>
      %103 = arith.addf %101, %102 : vector<8x128xf32>
      %104 = arith.negf %103 : vector<8x128xf32>
      %105 = math.exp %104 : vector<8x128xf32>
      %cst_35 = arith.constant 1.000000e+00 : f32
      %106 = vector.broadcast %cst_35 : f32 to vector<8x128xf32>
      %107 = arith.addf %106, %105 : vector<8x128xf32>
      %108 = arith.divf %106, %107 : vector<8x128xf32>
      %109 = vector.extract_strided_slice %99 {offsets = [0, 128], sizes = [8, 128], strides = [1, 1]} : vector<8x384xf32> to vector<8x128xf32>
      %110 = vector.extract_strided_slice %100 {offsets = [0, 128], sizes = [8, 128], strides = [1, 1]} : vector<8x384xf32> to vector<8x128xf32>
      %111 = arith.addf %109, %110 : vector<8x128xf32>
      %112 = arith.negf %111 : vector<8x128xf32>
      %113 = math.exp %112 : vector<8x128xf32>
      %cst_36 = arith.constant 1.000000e+00 : f32
      %114 = vector.broadcast %cst_36 : f32 to vector<8x128xf32>
      %115 = arith.addf %114, %113 : vector<8x128xf32>
      %116 = arith.divf %114, %115 : vector<8x128xf32>
      %117 = vector.extract_strided_slice %99 {offsets = [0, 256], sizes = [8, 128], strides = [1, 1]} : vector<8x384xf32> to vector<8x128xf32>
      %118 = vector.extract_strided_slice %100 {offsets = [0, 256], sizes = [8, 128], strides = [1, 1]} : vector<8x384xf32> to vector<8x128xf32>
      %119 = vector.broadcast %13 : vector<1x128xf32> to vector<8x128xf32>
      %120 = arith.addf %118, %119 : vector<8x128xf32>
      %121 = arith.mulf %108, %120 : vector<8x128xf32>
      %122 = arith.addf %117, %121 : vector<8x128xf32>
      %123 = math.tanh %122 : vector<8x128xf32>
      %124 = arith.subf %96, %123 : vector<8x128xf32>
      %125 = arith.mulf %116, %124 : vector<8x128xf32>
      %126 = arith.addf %123, %125 : vector<8x128xf32>
      %127 = arith.addi %23, %c2_i32 : i32
      %128 = vector.broadcast %127 : i32 to vector<8x1xi32>
      %129 = arith.cmpi slt, %128, %11 : vector<8x1xi32>
      %130 = vector.shape_cast %129 : vector<8x1xi1> to vector<8x1xi1>
      %131 = vector.broadcast %130 : vector<8x1xi1> to vector<8x128xi1>
      %132 = arith.select %131, %126, %96 : vector<8x128xi1>, vector<8x128xf32>
      %c3_i32 = arith.constant 3 : i32
      %133 = arith.index_cast %c3_i32 : i32 to index
      %c0_37 = arith.constant 0 : index
      %c0_38 = arith.constant 0 : index
      %134 = vector.load %arg14[%133, %c0_37, %c0_38] : memref<8x8x384xf32, #tpu.memory_space<vmem>>, vector<1x8x384xf32>
      %135 = vector.shape_cast %134 : vector<1x8x384xf32> to vector<8x384xf32>
      %cst_39 = arith.constant dense<0.000000e+00> : vector<8x384xf32>
      %136 = tpu.matmul %132, %12, %cst_39 {dimension_numbers = #tpu.dot_dimension_numbers<[1], [0], [0], [1], [0, 0, 1, 1], [], []>} : vector<8x128xf32>, vector<128x384xf32>, vector<8x384xf32> -> vector<8x384xf32>
      %137 = vector.extract_strided_slice %135 {offsets = [0, 0], sizes = [8, 128], strides = [1, 1]} : vector<8x384xf32> to vector<8x128xf32>
      %138 = vector.extract_strided_slice %136 {offsets = [0, 0], sizes = [8, 128], strides = [1, 1]} : vector<8x384xf32> to vector<8x128xf32>
      %139 = arith.addf %137, %138 : vector<8x128xf32>
      %140 = arith.negf %139 : vector<8x128xf32>
      %141 = math.exp %140 : vector<8x128xf32>
      %cst_40 = arith.constant 1.000000e+00 : f32
      %142 = vector.broadcast %cst_40 : f32 to vector<8x128xf32>
      %143 = arith.addf %142, %141 : vector<8x128xf32>
      %144 = arith.divf %142, %143 : vector<8x128xf32>
      %145 = vector.extract_strided_slice %135 {offsets = [0, 128], sizes = [8, 128], strides = [1, 1]} : vector<8x384xf32> to vector<8x128xf32>
      %146 = vector.extract_strided_slice %136 {offsets = [0, 128], sizes = [8, 128], strides = [1, 1]} : vector<8x384xf32> to vector<8x128xf32>
      %147 = arith.addf %145, %146 : vector<8x128xf32>
      %148 = arith.negf %147 : vector<8x128xf32>
      %149 = math.exp %148 : vector<8x128xf32>
      %cst_41 = arith.constant 1.000000e+00 : f32
      %150 = vector.broadcast %cst_41 : f32 to vector<8x128xf32>
      %151 = arith.addf %150, %149 : vector<8x128xf32>
      %152 = arith.divf %150, %151 : vector<8x128xf32>
      %153 = vector.extract_strided_slice %135 {offsets = [0, 256], sizes = [8, 128], strides = [1, 1]} : vector<8x384xf32> to vector<8x128xf32>
      %154 = vector.extract_strided_slice %136 {offsets = [0, 256], sizes = [8, 128], strides = [1, 1]} : vector<8x384xf32> to vector<8x128xf32>
      %155 = vector.broadcast %13 : vector<1x128xf32> to vector<8x128xf32>
      %156 = arith.addf %154, %155 : vector<8x128xf32>
      %157 = arith.mulf %144, %156 : vector<8x128xf32>
      %158 = arith.addf %153, %157 : vector<8x128xf32>
      %159 = math.tanh %158 : vector<8x128xf32>
      %160 = arith.subf %132, %159 : vector<8x128xf32>
      %161 = arith.mulf %152, %160 : vector<8x128xf32>
      %162 = arith.addf %159, %161 : vector<8x128xf32>
      %163 = arith.addi %23, %c3_i32 : i32
      %164 = vector.broadcast %163 : i32 to vector<8x1xi32>
      %165 = arith.cmpi slt, %164, %11 : vector<8x1xi32>
      %166 = vector.shape_cast %165 : vector<8x1xi1> to vector<8x1xi1>
      %167 = vector.broadcast %166 : vector<8x1xi1> to vector<8x128xi1>
      %168 = arith.select %167, %162, %132 : vector<8x128xi1>, vector<8x128xf32>
      %c4_i32 = arith.constant 4 : i32
      %169 = arith.index_cast %c4_i32 : i32 to index
      %c0_42 = arith.constant 0 : index
      %c0_43 = arith.constant 0 : index
      %170 = vector.load %arg14[%169, %c0_42, %c0_43] : memref<8x8x384xf32, #tpu.memory_space<vmem>>, vector<1x8x384xf32>
      %171 = vector.shape_cast %170 : vector<1x8x384xf32> to vector<8x384xf32>
      %cst_44 = arith.constant dense<0.000000e+00> : vector<8x384xf32>
      %172 = tpu.matmul %168, %12, %cst_44 {dimension_numbers = #tpu.dot_dimension_numbers<[1], [0], [0], [1], [0, 0, 1, 1], [], []>} : vector<8x128xf32>, vector<128x384xf32>, vector<8x384xf32> -> vector<8x384xf32>
      %173 = vector.extract_strided_slice %171 {offsets = [0, 0], sizes = [8, 128], strides = [1, 1]} : vector<8x384xf32> to vector<8x128xf32>
      %174 = vector.extract_strided_slice %172 {offsets = [0, 0], sizes = [8, 128], strides = [1, 1]} : vector<8x384xf32> to vector<8x128xf32>
      %175 = arith.addf %173, %174 : vector<8x128xf32>
      %176 = arith.negf %175 : vector<8x128xf32>
      %177 = math.exp %176 : vector<8x128xf32>
      %cst_45 = arith.constant 1.000000e+00 : f32
      %178 = vector.broadcast %cst_45 : f32 to vector<8x128xf32>
      %179 = arith.addf %178, %177 : vector<8x128xf32>
      %180 = arith.divf %178, %179 : vector<8x128xf32>
      %181 = vector.extract_strided_slice %171 {offsets = [0, 128], sizes = [8, 128], strides = [1, 1]} : vector<8x384xf32> to vector<8x128xf32>
      %182 = vector.extract_strided_slice %172 {offsets = [0, 128], sizes = [8, 128], strides = [1, 1]} : vector<8x384xf32> to vector<8x128xf32>
      %183 = arith.addf %181, %182 : vector<8x128xf32>
      %184 = arith.negf %183 : vector<8x128xf32>
      %185 = math.exp %184 : vector<8x128xf32>
      %cst_46 = arith.constant 1.000000e+00 : f32
      %186 = vector.broadcast %cst_46 : f32 to vector<8x128xf32>
      %187 = arith.addf %186, %185 : vector<8x128xf32>
      %188 = arith.divf %186, %187 : vector<8x128xf32>
      %189 = vector.extract_strided_slice %171 {offsets = [0, 256], sizes = [8, 128], strides = [1, 1]} : vector<8x384xf32> to vector<8x128xf32>
      %190 = vector.extract_strided_slice %172 {offsets = [0, 256], sizes = [8, 128], strides = [1, 1]} : vector<8x384xf32> to vector<8x128xf32>
      %191 = vector.broadcast %13 : vector<1x128xf32> to vector<8x128xf32>
      %192 = arith.addf %190, %191 : vector<8x128xf32>
      %193 = arith.mulf %180, %192 : vector<8x128xf32>
      %194 = arith.addf %189, %193 : vector<8x128xf32>
      %195 = math.tanh %194 : vector<8x128xf32>
      %196 = arith.subf %168, %195 : vector<8x128xf32>
      %197 = arith.mulf %188, %196 : vector<8x128xf32>
      %198 = arith.addf %195, %197 : vector<8x128xf32>
      %199 = arith.addi %23, %c4_i32 : i32
      %200 = vector.broadcast %199 : i32 to vector<8x1xi32>
      %201 = arith.cmpi slt, %200, %11 : vector<8x1xi32>
      %202 = vector.shape_cast %201 : vector<8x1xi1> to vector<8x1xi1>
      %203 = vector.broadcast %202 : vector<8x1xi1> to vector<8x128xi1>
      %204 = arith.select %203, %198, %168 : vector<8x128xi1>, vector<8x128xf32>
      %c5_i32 = arith.constant 5 : i32
      %205 = arith.index_cast %c5_i32 : i32 to index
      %c0_47 = arith.constant 0 : index
      %c0_48 = arith.constant 0 : index
      %206 = vector.load %arg14[%205, %c0_47, %c0_48] : memref<8x8x384xf32, #tpu.memory_space<vmem>>, vector<1x8x384xf32>
      %207 = vector.shape_cast %206 : vector<1x8x384xf32> to vector<8x384xf32>
      %cst_49 = arith.constant dense<0.000000e+00> : vector<8x384xf32>
      %208 = tpu.matmul %204, %12, %cst_49 {dimension_numbers = #tpu.dot_dimension_numbers<[1], [0], [0], [1], [0, 0, 1, 1], [], []>} : vector<8x128xf32>, vector<128x384xf32>, vector<8x384xf32> -> vector<8x384xf32>
      %209 = vector.extract_strided_slice %207 {offsets = [0, 0], sizes = [8, 128], strides = [1, 1]} : vector<8x384xf32> to vector<8x128xf32>
      %210 = vector.extract_strided_slice %208 {offsets = [0, 0], sizes = [8, 128], strides = [1, 1]} : vector<8x384xf32> to vector<8x128xf32>
      %211 = arith.addf %209, %210 : vector<8x128xf32>
      %212 = arith.negf %211 : vector<8x128xf32>
      %213 = math.exp %212 : vector<8x128xf32>
      %cst_50 = arith.constant 1.000000e+00 : f32
      %214 = vector.broadcast %cst_50 : f32 to vector<8x128xf32>
      %215 = arith.addf %214, %213 : vector<8x128xf32>
      %216 = arith.divf %214, %215 : vector<8x128xf32>
      %217 = vector.extract_strided_slice %207 {offsets = [0, 128], sizes = [8, 128], strides = [1, 1]} : vector<8x384xf32> to vector<8x128xf32>
      %218 = vector.extract_strided_slice %208 {offsets = [0, 128], sizes = [8, 128], strides = [1, 1]} : vector<8x384xf32> to vector<8x128xf32>
      %219 = arith.addf %217, %218 : vector<8x128xf32>
      %220 = arith.negf %219 : vector<8x128xf32>
      %221 = math.exp %220 : vector<8x128xf32>
      %cst_51 = arith.constant 1.000000e+00 : f32
      %222 = vector.broadcast %cst_51 : f32 to vector<8x128xf32>
      %223 = arith.addf %222, %221 : vector<8x128xf32>
      %224 = arith.divf %222, %223 : vector<8x128xf32>
      %225 = vector.extract_strided_slice %207 {offsets = [0, 256], sizes = [8, 128], strides = [1, 1]} : vector<8x384xf32> to vector<8x128xf32>
      %226 = vector.extract_strided_slice %208 {offsets = [0, 256], sizes = [8, 128], strides = [1, 1]} : vector<8x384xf32> to vector<8x128xf32>
      %227 = vector.broadcast %13 : vector<1x128xf32> to vector<8x128xf32>
      %228 = arith.addf %226, %227 : vector<8x128xf32>
      %229 = arith.mulf %216, %228 : vector<8x128xf32>
      %230 = arith.addf %225, %229 : vector<8x128xf32>
      %231 = math.tanh %230 : vector<8x128xf32>
      %232 = arith.subf %204, %231 : vector<8x128xf32>
      %233 = arith.mulf %224, %232 : vector<8x128xf32>
      %234 = arith.addf %231, %233 : vector<8x128xf32>
      %235 = arith.addi %23, %c5_i32 : i32
      %236 = vector.broadcast %235 : i32 to vector<8x1xi32>
      %237 = arith.cmpi slt, %236, %11 : vector<8x1xi32>
      %238 = vector.shape_cast %237 : vector<8x1xi1> to vector<8x1xi1>
      %239 = vector.broadcast %238 : vector<8x1xi1> to vector<8x128xi1>
      %240 = arith.select %239, %234, %204 : vector<8x128xi1>, vector<8x128xf32>
      %c6_i32 = arith.constant 6 : i32
      %241 = arith.index_cast %c6_i32 : i32 to index
      %c0_52 = arith.constant 0 : index
      %c0_53 = arith.constant 0 : index
      %242 = vector.load %arg14[%241, %c0_52, %c0_53] : memref<8x8x384xf32, #tpu.memory_space<vmem>>, vector<1x8x384xf32>
      %243 = vector.shape_cast %242 : vector<1x8x384xf32> to vector<8x384xf32>
      %cst_54 = arith.constant dense<0.000000e+00> : vector<8x384xf32>
      %244 = tpu.matmul %240, %12, %cst_54 {dimension_numbers = #tpu.dot_dimension_numbers<[1], [0], [0], [1], [0, 0, 1, 1], [], []>} : vector<8x128xf32>, vector<128x384xf32>, vector<8x384xf32> -> vector<8x384xf32>
      %245 = vector.extract_strided_slice %243 {offsets = [0, 0], sizes = [8, 128], strides = [1, 1]} : vector<8x384xf32> to vector<8x128xf32>
      %246 = vector.extract_strided_slice %244 {offsets = [0, 0], sizes = [8, 128], strides = [1, 1]} : vector<8x384xf32> to vector<8x128xf32>
      %247 = arith.addf %245, %246 : vector<8x128xf32>
      %248 = arith.negf %247 : vector<8x128xf32>
      %249 = math.exp %248 : vector<8x128xf32>
      %cst_55 = arith.constant 1.000000e+00 : f32
      %250 = vector.broadcast %cst_55 : f32 to vector<8x128xf32>
      %251 = arith.addf %250, %249 : vector<8x128xf32>
      %252 = arith.divf %250, %251 : vector<8x128xf32>
      %253 = vector.extract_strided_slice %243 {offsets = [0, 128], sizes = [8, 128], strides = [1, 1]} : vector<8x384xf32> to vector<8x128xf32>
      %254 = vector.extract_strided_slice %244 {offsets = [0, 128], sizes = [8, 128], strides = [1, 1]} : vector<8x384xf32> to vector<8x128xf32>
      %255 = arith.addf %253, %254 : vector<8x128xf32>
      %256 = arith.negf %255 : vector<8x128xf32>
      %257 = math.exp %256 : vector<8x128xf32>
      %cst_56 = arith.constant 1.000000e+00 : f32
      %258 = vector.broadcast %cst_56 : f32 to vector<8x128xf32>
      %259 = arith.addf %258, %257 : vector<8x128xf32>
      %260 = arith.divf %258, %259 : vector<8x128xf32>
      %261 = vector.extract_strided_slice %243 {offsets = [0, 256], sizes = [8, 128], strides = [1, 1]} : vector<8x384xf32> to vector<8x128xf32>
      %262 = vector.extract_strided_slice %244 {offsets = [0, 256], sizes = [8, 128], strides = [1, 1]} : vector<8x384xf32> to vector<8x128xf32>
      %263 = vector.broadcast %13 : vector<1x128xf32> to vector<8x128xf32>
      %264 = arith.addf %262, %263 : vector<8x128xf32>
      %265 = arith.mulf %252, %264 : vector<8x128xf32>
      %266 = arith.addf %261, %265 : vector<8x128xf32>
      %267 = math.tanh %266 : vector<8x128xf32>
      %268 = arith.subf %240, %267 : vector<8x128xf32>
      %269 = arith.mulf %260, %268 : vector<8x128xf32>
      %270 = arith.addf %267, %269 : vector<8x128xf32>
      %271 = arith.addi %23, %c6_i32 : i32
      %272 = vector.broadcast %271 : i32 to vector<8x1xi32>
      %273 = arith.cmpi slt, %272, %11 : vector<8x1xi32>
      %274 = vector.shape_cast %273 : vector<8x1xi1> to vector<8x1xi1>
      %275 = vector.broadcast %274 : vector<8x1xi1> to vector<8x128xi1>
      %276 = arith.select %275, %270, %240 : vector<8x128xi1>, vector<8x128xf32>
      %c7_i32 = arith.constant 7 : i32
      %277 = arith.index_cast %c7_i32 : i32 to index
      %c0_57 = arith.constant 0 : index
      %c0_58 = arith.constant 0 : index
      %278 = vector.load %arg14[%277, %c0_57, %c0_58] : memref<8x8x384xf32, #tpu.memory_space<vmem>>, vector<1x8x384xf32>
      %279 = vector.shape_cast %278 : vector<1x8x384xf32> to vector<8x384xf32>
      %cst_59 = arith.constant dense<0.000000e+00> : vector<8x384xf32>
      %280 = tpu.matmul %276, %12, %cst_59 {dimension_numbers = #tpu.dot_dimension_numbers<[1], [0], [0], [1], [0, 0, 1, 1], [], []>} : vector<8x128xf32>, vector<128x384xf32>, vector<8x384xf32> -> vector<8x384xf32>
      %281 = vector.extract_strided_slice %279 {offsets = [0, 0], sizes = [8, 128], strides = [1, 1]} : vector<8x384xf32> to vector<8x128xf32>
      %282 = vector.extract_strided_slice %280 {offsets = [0, 0], sizes = [8, 128], strides = [1, 1]} : vector<8x384xf32> to vector<8x128xf32>
      %283 = arith.addf %281, %282 : vector<8x128xf32>
      %284 = arith.negf %283 : vector<8x128xf32>
      %285 = math.exp %284 : vector<8x128xf32>
      %cst_60 = arith.constant 1.000000e+00 : f32
      %286 = vector.broadcast %cst_60 : f32 to vector<8x128xf32>
      %287 = arith.addf %286, %285 : vector<8x128xf32>
      %288 = arith.divf %286, %287 : vector<8x128xf32>
      %289 = vector.extract_strided_slice %279 {offsets = [0, 128], sizes = [8, 128], strides = [1, 1]} : vector<8x384xf32> to vector<8x128xf32>
      %290 = vector.extract_strided_slice %280 {offsets = [0, 128], sizes = [8, 128], strides = [1, 1]} : vector<8x384xf32> to vector<8x128xf32>
      %291 = arith.addf %289, %290 : vector<8x128xf32>
      %292 = arith.negf %291 : vector<8x128xf32>
      %293 = math.exp %292 : vector<8x128xf32>
      %cst_61 = arith.constant 1.000000e+00 : f32
      %294 = vector.broadcast %cst_61 : f32 to vector<8x128xf32>
      %295 = arith.addf %294, %293 : vector<8x128xf32>
      %296 = arith.divf %294, %295 : vector<8x128xf32>
      %297 = vector.extract_strided_slice %279 {offsets = [0, 256], sizes = [8, 128], strides = [1, 1]} : vector<8x384xf32> to vector<8x128xf32>
      %298 = vector.extract_strided_slice %280 {offsets = [0, 256], sizes = [8, 128], strides = [1, 1]} : vector<8x384xf32> to vector<8x128xf32>
      %299 = vector.broadcast %13 : vector<1x128xf32> to vector<8x128xf32>
      %300 = arith.addf %298, %299 : vector<8x128xf32>
      %301 = arith.mulf %288, %300 : vector<8x128xf32>
      %302 = arith.addf %297, %301 : vector<8x128xf32>
      %303 = math.tanh %302 : vector<8x128xf32>
      %304 = arith.subf %276, %303 : vector<8x128xf32>
      %305 = arith.mulf %296, %304 : vector<8x128xf32>
      %306 = arith.addf %303, %305 : vector<8x128xf32>
      %307 = arith.addi %23, %c7_i32 : i32
      %308 = vector.broadcast %307 : i32 to vector<8x1xi32>
      %309 = arith.cmpi slt, %308, %11 : vector<8x1xi32>
      %310 = vector.shape_cast %309 : vector<8x1xi1> to vector<8x1xi1>
      %311 = vector.broadcast %310 : vector<8x1xi1> to vector<8x128xi1>
      %312 = arith.select %311, %306, %276 : vector<8x128xi1>, vector<8x128xf32>
      %c8_i32_62 = arith.constant 8 : i32
      %c0_63 = arith.constant 0 : index
      %c0_64 = arith.constant 0 : index
      %313 = vector.load %arg13[%c0_63, %c0_64] : memref<8x128xf32, #tpu.memory_space<vmem>>, vector<8x128xf32>
      tpu.vector_store %arg13[%c0_63, %c0_64], %312 {strides = array<i32>} : memref<8x128xf32, #tpu.memory_space<vmem>>, vector<8x128xf32>,
    } else {
    }
    %c0_i32_2 = arith.constant 0 : i32
    %8 = arith.cmpi eq, %arg1, %c0_i32_2 : i32
    %9 = arith.extui %8 : i1 to i32
    %c0_i32_3 = arith.constant 0 : i32
    %10 = arith.cmpi ne, %9, %c0_i32_3 : i32
    scf.if %10 {
      %c0 = arith.constant 0 : index
      %c0_4 = arith.constant 0 : index
      %11 = vector.load %arg13[%c0, %c0_4] : memref<8x128xf32, #tpu.memory_space<vmem>>, vector<8x128xf32>
      %c0_5 = arith.constant 0 : index
      %c0_6 = arith.constant 0 : index
      %12 = vector.load %arg10[%c0_5, %c0_6] : memref<128x128xf32, #tpu.memory_space<vmem>>, vector<128x128xf32>
      %cst = arith.constant dense<0.000000e+00> : vector<8x128xf32>
      %13 = tpu.matmul %11, %12, %cst {dimension_numbers = #tpu.dot_dimension_numbers<[1], [0], [0], [1], [0, 0, 1, 1], [], []>} : vector<8x128xf32>, vector<128x128xf32>, vector<8x128xf32> -> vector<8x128xf32>
      %c0_7 = arith.constant 0 : index
      %c0_8 = arith.constant 0 : index
      %14 = vector.load %arg11[%c0_7, %c0_8] : memref<1x128xf32, #tpu.memory_space<vmem>>, vector<1x128xf32>
      %15 = vector.broadcast %14 : vector<1x128xf32> to vector<8x128xf32>
      %16 = arith.addf %13, %15 : vector<8x128xf32>
      %17 = arith.negf %16 : vector<8x128xf32>
      %18 = math.exp %17 : vector<8x128xf32>
      %cst_9 = arith.constant 1.000000e+00 : f32
      %19 = vector.broadcast %cst_9 : f32 to vector<8x128xf32>
      %20 = arith.addf %19, %18 : vector<8x128xf32>
      %21 = arith.divf %19, %20 : vector<8x128xf32>
      %c0_10 = arith.constant 0 : index
      %c0_11 = arith.constant 0 : index
      %22 = vector.load %arg12[%c0_10, %c0_11] : memref<8x128xf32, #tpu.memory_space<vmem>>, vector<8x128xf32>
      tpu.vector_store %arg12[%c0_10, %c0_11], %21 {strides = array<i32>} : memref<8x128xf32, #tpu.memory_space<vmem>>, vector<8x128xf32>,
    } else {
    }
    return
  }
  func.func @transform_0(%arg0: i32, %arg1: i32, %arg2: memref<1xi32, #tpu.memory_space<smem>>, %arg3: memref<1x1xi32, #tpu.memory_space<smem>>) -> (i32, i32) {
    %c0_i32 = arith.constant 0 : i32
    %c0_i32_0 = arith.constant 0 : i32
    return %arg0, %c0_i32 : i32, i32
  }
  func.func @transform_1(%arg0: i32, %arg1: i32, %arg2: memref<1xi32, #tpu.memory_space<smem>>, %arg3: memref<1x1xi32, #tpu.memory_space<smem>>) -> (i32, i32, i32) {
    %0 = arith.index_cast %arg0 : i32 to index
    %1 = arith.index_cast %arg1 : i32 to index
    %2 = memref.load %arg3[%0, %1] : memref<1x1xi32, #tpu.memory_space<smem>>
    %c0_i32 = arith.constant 0 : i32
    %c0_i32_0 = arith.constant 0 : i32
    return %2, %arg0, %c0_i32 : i32, i32, i32
  }
  func.func @transform_2(%arg0: i32, %arg1: i32, %arg2: memref<1xi32, #tpu.memory_space<smem>>, %arg3: memref<1x1xi32, #tpu.memory_space<smem>>) -> (i32, i32) {
    %c0_i32 = arith.constant 0 : i32
    %c0_i32_0 = arith.constant 0 : i32
    %c0_i32_1 = arith.constant 0 : i32
    return %c0_i32, %c0_i32_0 : i32, i32
  }
  func.func @transform_3(%arg0: i32, %arg1: i32, %arg2: memref<1xi32, #tpu.memory_space<smem>>, %arg3: memref<1x1xi32, #tpu.memory_space<smem>>) -> (i32, i32) {
    %c0_i32 = arith.constant 0 : i32
    %c0_i32_0 = arith.constant 0 : i32
    %c0_i32_1 = arith.constant 0 : i32
    return %c0_i32, %c0_i32_0 : i32, i32
  }
  func.func @transform_4(%arg0: i32, %arg1: i32, %arg2: memref<1xi32, #tpu.memory_space<smem>>, %arg3: memref<1x1xi32, #tpu.memory_space<smem>>) -> (i32, i32) {
    %c0_i32 = arith.constant 0 : i32
    %c0_i32_0 = arith.constant 0 : i32
    %c0_i32_1 = arith.constant 0 : i32
    return %c0_i32, %c0_i32_0 : i32, i32
  }
  func.func @transform_5(%arg0: i32, %arg1: i32, %arg2: memref<1xi32, #tpu.memory_space<smem>>, %arg3: memref<1x1xi32, #tpu.memory_space<smem>>) -> (i32, i32) {
    %c0_i32 = arith.constant 0 : i32
    %c0_i32_0 = arith.constant 0 : i32
    %c0_i32_1 = arith.constant 0 : i32
    return %c0_i32, %c0_i32_0 : i32, i32
  }
  func.func @transform_6(%arg0: i32, %arg1: i32, %arg2: memref<1xi32, #tpu.memory_space<smem>>, %arg3: memref<1x1xi32, #tpu.memory_space<smem>>) -> (i32, i32) {
    %c0_i32 = arith.constant 0 : i32
    %c0_i32_0 = arith.constant 0 : i32
    %c0_i32_1 = arith.constant 0 : i32
    return %c0_i32, %c0_i32_0 : i32, i32
  }
  func.func @transform_7(%arg0: i32, %arg1: i32, %arg2: memref<1xi32, #tpu.memory_space<smem>>, %arg3: memref<1x1xi32, #tpu.memory_space<smem>>) -> (i32, i32) {
    %c0_i32 = arith.constant 0 : i32
    %c0_i32_0 = arith.constant 0 : i32
    %c0_i32_1 = arith.constant 0 : i32
    return %c0_i32, %c0_i32_0 : i32, i32
  }
  func.func @transform_8(%arg0: i32, %arg1: i32, %arg2: memref<1xi32, #tpu.memory_space<smem>>, %arg3: memref<1x1xi32, #tpu.memory_space<smem>>) -> (i32, i32) {
    %c0_i32 = arith.constant 0 : i32
    %c0_i32_0 = arith.constant 0 : i32
    return %arg0, %c0_i32 : i32, i32
  }
}

</mosaic_0001>

<llo_original>
// kernel: tpu_custom_call.1
$region0: #{tpu_custom_call.1}
  #allocation0 [shape = 'u32[]', space=smem, size = 0x4, offset = 0x4, fixed_abs, tag = 'smem constant byte address 0x4 - core index']
  #allocation1 [shape = 'u32[144,128]{1,0:T(1,128)}', space=vmem, size = 0x12000, scoped, tag = 'internal scratch']
  #allocation2 [shape = 'f32[8,128]{1,0:T(8,128)}', space=vmem, size = 0x1000, scoped, tag = 'scratch operand']
  #allocation3 [shape = 'f32[8,8,384]{2,1,0:T(8,128)}', space=vmem, size = 0x18000, scoped, tag = 'scratch operand']
  #allocation4 [shape = 's32[1]{0}', space=sflag, size = 0x4, scoped, tag = 'scoped memory for tpu_custom_call.1']
  #allocation5 [shape = 's32[1]{0:T(128)S(6)}', space=smem, size = 0x200, scoped, tag = 'prefetched SMEM operand 0']
  #allocation6 [shape = 's32[1,1]{1,0:T(1,128)S(6)}', space=smem, size = 0x200, scoped, tag = 'prefetched SMEM operand 1']
  %s0 = inlined_call_operand.<no memory space> [shape: s32[1], index: 0, kind: input, shape index: {}]
  %s1 = inlined_call_operand.<no memory space> [shape: s32[1,1], index: 1, kind: input, shape index: {}]
  %s2 = inlined_call_operand.vmem [shape: s32[8,1], index: 2, kind: input, shape index: {}]
  %s3 = inlined_call_operand.hbm [shape: f32[8,8,128], index: 3, kind: input, shape index: {}]
  %s4 = inlined_call_operand.hbm [shape: f32[128,384], index: 4, kind: input, shape index: {}]
  %s5 = inlined_call_operand.vmem [shape: f32[1,384], index: 5, kind: input, shape index: {}]
  %s6 = inlined_call_operand.hbm [shape: f32[128,384], index: 6, kind: input, shape index: {}]
  %s7 = inlined_call_operand.vmem [shape: f32[1,128], index: 7, kind: input, shape index: {}]
  %s8 = inlined_call_operand.hbm [shape: f32[128,128], index: 8, kind: input, shape index: {}]
  %s9 = inlined_call_operand.vmem [shape: f32[1,128], index: 9, kind: input, shape index: {}]
  %s10 = inlined_call_operand.hbm [shape: f32[8,128], index: 10, kind: output, shape index: {}]
  %s11 = sld [smem:[#allocation0]]
  $region70: #{tpu_custom_call.1} parent=0
    _
  %s13 = ssub.s32 1, %s11
  %s14 = scalar_select 0, %s13, %s11
  %15 = sst [smem:[#allocation5]] %s0
  %16 = sst [smem:[#allocation6]] %s1
  $region1: #{tpu_custom_call.1} parent=0
    #allocation7 [shape = 'u8[32768]{0}', space=vmem, size = 0x8000, scoped, tag = 'input window, operand 3, single buffered']
    #allocation8 [shape = 's32[1]{0}', space=sflag, size = 0x4, scoped, tag = 'scoped memory for tpu_custom_call.1']
    #allocation9 [shape = 's32[1]{0}', space=sflag, size = 0x4, scoped, tag = 'scoped memory for tpu_custom_call.1']
    #allocation10 [shape = 'u8[196608]{0}', space=vmem, size = 0x30000, scoped, tag = 'input window, operand 4, single buffered']
    #allocation11 [shape = 's32[1]{0}', space=sflag, size = 0x4, scoped, tag = 'scoped memory for tpu_custom_call.1']
    #allocation12 [shape = 'u8[196608]{0}', space=vmem, size = 0x30000, scoped, tag = 'input window, operand 6, single buffered']
    #allocation13 [shape = 'u8[65536]{0}', space=vmem, size = 0x10000, scoped, tag = 'input window, operand 8, single buffered']
    #allocation14 [shape = 's32[1]{0}', space=sflag, size = 0x4, scoped, tag = 'scoped memory for tpu_custom_call.1']
    #allocation15 [shape = 'u8[4096]{0}', space=vmem, size = 0x1000, scoped, tag = 'output window, operand 0, single buffered']
    %17 = vsyncpa [#allocation8], 0
    %18 = vsyncpa [#allocation11], 0
    %19 = vsyncpa [#allocation14], 0
    %20 = vsyncpa [#allocation9], 0
    // Predicated region
    $region2: #{tpu_custom_call.1} parent=1 // pred_check
      _
    $region3: #{tpu_custom_call.1} parent=1 // pred_check_branch
      %22 = sbr.rel (0) target = $region5
    $region4: #{tpu_custom_call.1} parent=1 // pred_region
      _
    $region5: #{tpu_custom_call.1} parent=1 // pred_fallthru
      _
    // Predicated region
    $region6: #{tpu_custom_call.1} parent=1 // pred_check
      _
    $region7: #{tpu_custom_call.1} parent=1 // pred_check_branch
      %24 = sbr.rel (0) target = $region9
    $region8: #{tpu_custom_call.1} parent=1 // pred_region
      %s25 = sadd.s32 0, 0
      %s26 = smul.u32 %s25, 128
      %s27 = sadd.s32 %s26, 0
      %s28 = sld [smem:[#allocation6 + %s27]]
      %s29 = smul.u32 8, %s28
      %s31 = ssub.s32 1024, 1024
      %32 = vsyncadd [#allocation8], %s31
      %s33 = smul.addr %s29, 128
      %s34 = scalar_lea.hbm %s3, %s33
      %s35 = sshll.u32 [#allocation7], 4
      %s36 = int_to_ptr.vmem [resolvable:$true] %s35
      %41 = dma.hbm_to_vmem [thread:$0]  %s34, 1024, %s36, [#allocation8], 128, 128, 8
    $region9: #{tpu_custom_call.1} parent=1 // pred_fallthru
      _
    // Predicated region
    $region10: #{tpu_custom_call.1} parent=1 // pred_check
      _
    $region11: #{tpu_custom_call.1} parent=1 // pred_check_branch
      %43 = sbr.rel (0) target = $region13
    $region12: #{tpu_custom_call.1} parent=1 // pred_region
      %s45 = ssub.s32 6144, 6144
      %46 = vsyncadd [#allocation11], %s45
      %s47 = sshll.u32 [#allocation10], 4
      %s48 = int_to_ptr.vmem [resolvable:$true] %s47
      %53 = dma.hbm_to_vmem [thread:$0]  %s4, 6144, %s48, [#allocation11], 384, 384, 24
    $region13: #{tpu_custom_call.1} parent=1 // pred_fallthru
      _
    // Predicated region
    $region14: #{tpu_custom_call.1} parent=1 // pred_check
      _
    $region15: #{tpu_custom_call.1} parent=1 // pred_check_branch
      %55 = sbr.rel (0) target = $region17
    $region16: #{tpu_custom_call.1} parent=1 // pred_region
      _
    $region17: #{tpu_custom_call.1} parent=1 // pred_fallthru
      _
    // Predicated region
    $region18: #{tpu_custom_call.1} parent=1 // pred_check
      _
    $region19: #{tpu_custom_call.1} parent=1 // pred_check_branch
      %57 = sbr.rel (0) target = $region21
    $region20: #{tpu_custom_call.1} parent=1 // pred_region
      %s59 = ssub.s32 6144, 6144
      %60 = vsyncadd [#allocation11], %s59
      %s61 = sshll.u32 [#allocation12], 4
      %s62 = int_to_ptr.vmem [resolvable:$true] %s61
      %67 = dma.hbm_to_vmem [thread:$0]  %s6, 6144, %s62, [#allocation11], 384, 384, 24
    $region21: #{tpu_custom_call.1} parent=1 // pred_fallthru
      _
    // Predicated region
    $region22: #{tpu_custom_call.1} parent=1 // pred_check
      _
    $region23: #{tpu_custom_call.1} parent=1 // pred_check_branch
      %69 = sbr.rel (0) target = $region25
    $region24: #{tpu_custom_call.1} parent=1 // pred_region
      _
    $region25: #{tpu_custom_call.1} parent=1 // pred_fallthru
      _
    // Predicated region
    $region26: #{tpu_custom_call.1} parent=1 // pred_check
      _
    $region27: #{tpu_custom_call.1} parent=1 // pred_check_branch
      %71 = sbr.rel (0) target = $region29
    $region28: #{tpu_custom_call.1} parent=1 // pred_region
      %s73 = ssub.s32 2048, 2048
      %74 = vsyncadd [#allocation14], %s73
      %s75 = sshll.u32 [#allocation13], 4
      %s76 = int_to_ptr.vmem [resolvable:$true] %s75
      %81 = dma.hbm_to_vmem [thread:$0]  %s8, 2048, %s76, [#allocation14], 128, 128, 8
    $region29: #{tpu_custom_call.1} parent=1 // pred_fallthru
      _
    // Predicated region
    $region30: #{tpu_custom_call.1} parent=1 // pred_check
      _
    $region31: #{tpu_custom_call.1} parent=1 // pred_check_branch
      %83 = sbr.rel (0) target = $region33
    $region32: #{tpu_custom_call.1} parent=1 // pred_region
      _
    $region33: #{tpu_custom_call.1} parent=1 // pred_fallthru
      _
    // Predicated region
    $region34: #{tpu_custom_call.1} parent=1 // pred_check
      _
    $region35: #{tpu_custom_call.1} parent=1 // pred_check_branch
      %85 = sbr.rel (0) target = $region37
    $region36: #{tpu_custom_call.1} parent=1 // pred_region
      %86 = dma.done [#allocation8], 1024
    $region37: #{tpu_custom_call.1} parent=1 // pred_fallthru
      _
    // Predicated region
    $region38: #{tpu_custom_call.1} parent=1 // pred_check
      _
    $region39: #{tpu_custom_call.1} parent=1 // pred_check_branch
      %88 = sbr.rel (0) target = $region41
    $region40: #{tpu_custom_call.1} parent=1 // pred_region
      %89 = dma.done [#allocation11], 6144
    $region41: #{tpu_custom_call.1} parent=1 // pred_fallthru
      _
    // Predicated region
    $region42: #{tpu_custom_call.1} parent=1 // pred_check
      _
    $region43: #{tpu_custom_call.1} parent=1 // pred_check_branch
      %91 = sbr.rel (0) target = $region45
    $region44: #{tpu_custom_call.1} parent=1 // pred_region
      %92 = dma.done [#allocation11], 6144
    $region45: #{tpu_custom_call.1} parent=1 // pred_fallthru
      _
    // Predicated region
    $region46: #{tpu_custom_call.1} parent=1 // pred_check
      _
    $region47: #{tpu_custom_call.1} parent=1 // pred_check_branch
      %94 = sbr.rel (0) target = $region49
    $region48: #{tpu_custom_call.1} parent=1 // pred_region
      %95 = dma.done [#allocation14], 2048
    $region49: #{tpu_custom_call.1} parent=1 // pred_fallthru
      _
    %s96 = sadd.s32 0, 0
    %s97 = smul.u32 %s96, 128
    %s98 = sadd.s32 %s97, 0
    %s99 = sld [smem:[#allocation6 + %s98]]
    %s100 = smul.u32 8, %s99
    %p101 = scmp.eq.s32.totalorder 0, 0
    // Predicated region
    $region50: #{tpu_custom_call.1} parent=1 // pred_check
      %p102 = pneg %p101
    $region51: #{tpu_custom_call.1} parent=1 // pred_check_branch
      %104 = sbr.rel (%p102) target = $region53
    $region52: #{tpu_custom_call.1} parent=1 // pred_region
      %105 = vst [vmem:[#allocation2] sm:$0xff] 0.0
    $region53: #{tpu_custom_call.1} parent=1 // pred_fallthru
      _
    %s106 = sld [smem:[#allocation5]]
    %p107 = scmp.lt.s32.totalorder 0, %s106
    // Predicated region
    $region54: #{tpu_custom_call.1} parent=1 // pred_check
      %p108 = pneg %p107
    $region55: #{tpu_custom_call.1} parent=1 // pred_check_branch
      %110 = sbr.rel (%p108) target = $region57
    $region56: #{tpu_custom_call.1} parent=1 // pred_region
      %v111 = vld [vmem:[%s2] sm:$0xff]
      %v112 = vld [vmem:[#allocation12] sm:$0xff]
      %v113 = vld [vmem:[#allocation12 + $0x8] sm:$0xff]
      %v114 = vld [vmem:[#allocation12 + $0x10] sm:$0xff]
      %v115 = vld [vmem:[#allocation12 + $0x18] sm:$0xff]
      %v116 = vld [vmem:[#allocation12 + $0x20] sm:$0xff]
      %v117 = vld [vmem:[#allocation12 + $0x28] sm:$0xff]
      %v118 = vld [vmem:[#allocation12 + $0x30] sm:$0xff]
      %v119 = vld [vmem:[#allocation12 + $0x38] sm:$0xff]
      %v120 = vld [vmem:[#allocation12 + $0x40] sm:$0xff]
      %v121 = vld [vmem:[#allocation12 + $0x48] sm:$0xff]
      %v122 = vld [vmem:[#allocation12 + $0x50] sm:$0xff]
      %v123 = vld [vmem:[#allocation12 + $0x58] sm:$0xff]
      %v124 = vld [vmem:[#allocation12 + $0x60] sm:$0xff]
      %v125 = vld [vmem:[#allocation12 + $0x68] sm:$0xff]
      %v126 = vld [vmem:[#allocation12 + $0x70] sm:$0xff]
      %v127 = vld [vmem:[#allocation12 + $0x78] sm:$0xff]
      %v128 = vld [vmem:[#allocation12 + $0x80] sm:$0xff]
      %v129 = vld [vmem:[#allocation12 + $0x88] sm:$0xff]
      %v130 = vld [vmem:[#allocation12 + $0x90] sm:$0xff]
      %v131 = vld [vmem:[#allocation12 + $0x98] sm:$0xff]
      %v132 = vld [vmem:[#allocation12 + $0xa0] sm:$0xff]
      %v133 = vld [vmem:[#allocation12 + $0xa8] sm:$0xff]
      %v134 = vld [vmem:[#allocation12 + $0xb0] sm:$0xff]
      %v135 = vld [vmem:[#allocation12 + $0xb8] sm:$0xff]
      %v136 = vld [vmem:[#allocation12 + $0xc0] sm:$0xff]
      %v137 = vld [vmem:[#allocation12 + $0xc8] sm:$0xff]
      %v138 = vld [vmem:[#allocation12 + $0xd0] sm:$0xff]
      %v139 = vld [vmem:[#allocation12 + $0xd8] sm:$0xff]
      %v140 = vld [vmem:[#allocation12 + $0xe0] sm:$0xff]
      %v141 = vld [vmem:[#allocation12 + $0xe8] sm:$0xff]
      %v142 = vld [vmem:[#allocation12 + $0xf0] sm:$0xff]
      %v143 = vld [vmem:[#allocation12 + $0xf8] sm:$0xff]
      %v144 = vld [vmem:[#allocation12 + $0x100] sm:$0xff]
      %v145 = vld [vmem:[#allocation12 + $0x108] sm:$0xff]
      %v146 = vld [vmem:[#allocation12 + $0x110] sm:$0xff]
      %v147 = vld [vmem:[#allocation12 + $0x118] sm:$0xff]
      %v148 = vld [vmem:[#allocation12 + $0x120] sm:$0xff]
      %v149 = vld [vmem:[#allocation12 + $0x128] sm:$0xff]
      %v150 = vld [vmem:[#allocation12 + $0x130] sm:$0xff]
      %v151 = vld [vmem:[#allocation12 + $0x138] sm:$0xff]
      %v152 = vld [vmem:[#allocation12 + $0x140] sm:$0xff]
      %v153 = vld [vmem:[#allocation12 + $0x148] sm:$0xff]
      %v154 = vld [vmem:[#allocation12 + $0x150] sm:$0xff]
      %v155 = vld [vmem:[#allocation12 + $0x158] sm:$0xff]
      %v156 = vld [vmem:[#allocation12 + $0x160] sm:$0xff]
      %v157 = vld [vmem:[#allocation12 + $0x168] sm:$0xff]
      %v158 = vld [vmem:[#allocation12 + $0x170] sm:$0xff]
      %v159 = vld [vmem:[#allocation12 + $0x178] sm:$0xff]
      %v160 = vld [vmem:[%s7] sm:$0x1]
      %v161 = vld [vmem:[#allocation7] sm:$0xff]
      %v162 = vld [vmem:[#allocation7 + $0x8] sm:$0xff]
      %v163 = vld [vmem:[#allocation7 + $0x10] sm:$0xff]
      %v164 = vld [vmem:[#allocation7 + $0x18] sm:$0xff]
      %v165 = vld [vmem:[#allocation7 + $0x20] sm:$0xff]
      %v166 = vld [vmem:[#allocation7 + $0x28] sm:$0xff]
      %v167 = vld [vmem:[#allocation7 + $0x30] sm:$0xff]
      %v168 = vld [vmem:[#allocation7 + $0x38] sm:$0xff]
      %v169 = vld [vmem:[#allocation10] sm:$0xff]
      %v170 = vld [vmem:[#allocation10 + $0x8] sm:$0xff]
      %v171 = vld [vmem:[#allocation10 + $0x10] sm:$0xff]
      %v172 = vld [vmem:[#allocation10 + $0x18] sm:$0xff]
      %v173 = vld [vmem:[#allocation10 + $0x20] sm:$0xff]
      %v174 = vld [vmem:[#allocation10 + $0x28] sm:$0xff]
      %v175 = vld [vmem:[#allocation10 + $0x30] sm:$0xff]
      %v176 = vld [vmem:[#allocation10 + $0x38] sm:$0xff]
      %v177 = vld [vmem:[#allocation10 + $0x40] sm:$0xff]
      %v178 = vld [vmem:[#allocation10 + $0x48] sm:$0xff]
      %v179 = vld [vmem:[#allocation10 + $0x50] sm:$0xff]
      %v180 = vld [vmem:[#allocation10 + $0x58] sm:$0xff]
      %v181 = vld [vmem:[#allocation10 + $0x60] sm:$0xff]
      %v182 = vld [vmem:[#allocation10 + $0x68] sm:$0xff]
      %v183 = vld [vmem:[#allocation10 + $0x70] sm:$0xff]
      %v184 = vld [vmem:[#allocation10 + $0x78] sm:$0xff]
      %v185 = vld [vmem:[#allocation10 + $0x80] sm:$0xff]
      %v186 = vld [vmem:[#allocation10 + $0x88] sm:$0xff]
      %v187 = vld [vmem:[#allocation10 + $0x90] sm:$0xff]
      %v188 = vld [vmem:[#allocation10 + $0x98] sm:$0xff]
      %v189 = vld [vmem:[#allocation10 + $0xa0] sm:$0xff]
      %v190 = vld [vmem:[#allocation10 + $0xa8] sm:$0xff]
      %v191 = vld [vmem:[#allocation10 + $0xb0] sm:$0xff]
      %v192 = vld [vmem:[#allocation10 + $0xb8] sm:$0xff]
      %v193 = vld [vmem:[#allocation10 + $0xc0] sm:$0xff]
      %v194 = vld [vmem:[#allocation10 + $0xc8] sm:$0xff]
      %v195 = vld [vmem:[#allocation10 + $0xd0] sm:$0xff]
      %v196 = vld [vmem:[#allocation10 + $0xd8] sm:$0xff]
      %v197 = vld [vmem:[#allocation10 + $0xe0] sm:$0xff]
      %v198 = vld [vmem:[#allocation10 + $0xe8] sm:$0xff]
      %v199 = vld [vmem:[#allocation10 + $0xf0] sm:$0xff]
      %v200 = vld [vmem:[#allocation10 + $0xf8] sm:$0xff]
      %v201 = vld [vmem:[#allocation10 + $0x100] sm:$0xff]
      %v202 = vld [vmem:[#allocation10 + $0x108] sm:$0xff]
      %v203 = vld [vmem:[#allocation10 + $0x110] sm:$0xff]
      %v204 = vld [vmem:[#allocation10 + $0x118] sm:$0xff]
      %v205 = vld [vmem:[#allocation10 + $0x120] sm:$0xff]
      %v206 = vld [vmem:[#allocation10 + $0x128] sm:$0xff]
      %v207 = vld [vmem:[#allocation10 + $0x130] sm:$0xff]
      %v208 = vld [vmem:[#allocation10 + $0x138] sm:$0xff]
      %v209 = vld [vmem:[#allocation10 + $0x140] sm:$0xff]
      %v210 = vld [vmem:[#allocation10 + $0x148] sm:$0xff]
      %v211 = vld [vmem:[#allocation10 + $0x150] sm:$0xff]
      %v212 = vld [vmem:[#allocation10 + $0x158] sm:$0xff]
      %v213 = vld [vmem:[#allocation10 + $0x160] sm:$0xff]
      %v214 = vld [vmem:[#allocation10 + $0x168] sm:$0xff]
      %v215 = vld [vmem:[#allocation10 + $0x170] sm:$0xff]
      %v216 = vld [vmem:[#allocation10 + $0x178] sm:$0xff]
      %v217 = vld [vmem:[%s5] sm:$0x7]
      %v219 = vlaneseq
      %v220 = vshrl.u32 %v219, 7
      %v221 = vsub.s32 0, %v220
      %v222 = vrot.slane %v217, %v221
      %v223 = vlaneseq
      %v224 = vshrl.u32 %v223, 7
      %v225 = vsub.s32 1, %v224
      %v226 = vrot.slane %v217, %v225
      %v227 = vlaneseq
      %v228 = vshrl.u32 %v227, 7
      %v229 = vsub.s32 2, %v228
      %v230 = vrot.slane %v217, %v229
      %234 = vmatprep.subr.mxu0 %v215
      %235 = vmatpush1.msra.mxu0 %v214
      %236 = vmatprep.subr.mxu0 %v212
      %237 = vmatpush1.msra.mxu0 %v211
      %238 = vmatprep.subr.mxu0 %v209
      %239 = vmatpush1.msra.mxu0 %v208
      %240 = vmatprep.subr.mxu0 %v206
      %241 = vmatpush1.msra.mxu0 %v205
      %242 = vmatprep.subr.mxu0 %v203
      %243 = vmatpush1.msra.mxu0 %v202
      %244 = vmatprep.subr.mxu0 %v200
      %245 = vmatpush1.msra.mxu0 %v199
      %246 = vmatprep.subr.mxu0 %v197
      %247 = vmatpush1.msra.mxu0 %v196
      %248 = vmatprep.subr.mxu0 %v194
      %249 = vmatpush1.msra.mxu0 %v193
      %250 = vmatprep.subr.mxu0 %v191
      %251 = vmatpush1.msra.mxu0 %v190
      %252 = vmatprep.subr.mxu0 %v188
      %253 = vmatpush1.msra.mxu0 %v187
      %254 = vmatprep.subr.mxu0 %v185
      %255 = vmatpush1.msra.mxu0 %v184
      %256 = vmatprep.subr.mxu0 %v182
      %257 = vmatpush1.msra.mxu0 %v181
      %258 = vmatprep.subr.mxu0 %v179
      %259 = vmatpush1.msra.mxu0 %v178
      %260 = vmatprep.subr.mxu0 %v176
      %261 = vmatpush1.msra.mxu0 %v175
      %262 = vmatprep.subr.mxu0 %v173
      %263 = vmatpush1.msra.mxu0 %v172
      %264 = vmatprep.subr.mxu0 %v170
      %265 = vmatpush1.msra.mxu0 %v169
      %266 = vmatprep.subr.mxu0 0.0
      %267 = vmatpush2.msra.mxu0 0.0
      %268 = vmatprep.subr.mxu0 0.0
      %269 = vmatpush2.msra.mxu0 0.0
      %270 = vmatprep.subr.mxu0 0.0
      %271 = vmatpush2.msra.mxu0 0.0
      %272 = vmatprep.subr.mxu0 0.0
      %273 = vmatpush2.msra.mxu0 0.0
      %274 = vmatprep.subr.mxu0 0.0
      %275 = vmatpush2.msra.mxu0 0.0
      %276 = vmatprep.subr.mxu0 0.0
      %277 = vmatpush2.msra.mxu0 0.0
      %278 = vmatprep.subr.mxu0 0.0
      %279 = vmatpush2.msra.mxu0 0.0
      %280 = vmatprep.subr.mxu0 0.0
      %281 = vmatpush2.msra.mxu0 0.0
      %282 = vmatprep.subr.mxu0 0.0
      %283 = vmatpush2.msra.mxu0 0.0
      %284 = vmatprep.subr.mxu0 0.0
      %285 = vmatpush2.msra.mxu0 0.0
      %286 = vmatprep.subr.mxu0 0.0
      %287 = vmatpush2.msra.mxu0 0.0
      %288 = vmatprep.subr.mxu0 0.0
      %289 = vmatpush2.msra.mxu0 0.0
      %290 = vmatprep.subr.mxu0 0.0
      %291 = vmatpush2.msra.mxu0 0.0
      %292 = vmatprep.subr.mxu0 0.0
      %293 = vmatpush2.msra.mxu0 0.0
      %294 = vmatprep.subr.mxu0 0.0
      %295 = vmatpush2.msra.mxu0 0.0
      %296 = vmatprep.subr.mxu0 0.0
      %297 = vmatpush2.msra.mxu0 0.0
      %298 = vmatprep.mubr.f32.mxu0 0.0
      %299 = vmatmul.mubr.f32.gmra.mxu0 %v161
      %v300 = vpop.f32.mrf.mxu0
      %v301 = vadd.f32 %v222, %v300
      %v302 = vpop.f32.mrf.mxu0
      %v303 = vadd.f32 %v226, %v302
      %304 = vmatprep.mubr.f32.mxu0 0.0
      %305 = vmatmul.mubr.f32.gmra.mxu0 %v162
      %v306 = vpop.f32.mrf.mxu0
      %v307 = vadd.f32 %v222, %v306
      %v308 = vpop.f32.mrf.mxu0
      %v309 = vadd.f32 %v226, %v308
      %310 = vmatprep.mubr.f32.mxu0 0.0
      %311 = vmatmul.mubr.f32.gmra.mxu0 %v163
      %v312 = vpop.f32.mrf.mxu0
      %v313 = vadd.f32 %v222, %v312
      %v314 = vpop.f32.mrf.mxu0
      %v315 = vadd.f32 %v226, %v314
      %316 = vmatprep.mubr.f32.mxu0 0.0
      %317 = vmatmul.mubr.f32.gmra.mxu0 %v164
      %v318 = vpop.f32.mrf.mxu0
      %v319 = vadd.f32 %v222, %v318
      %v320 = vpop.f32.mrf.mxu0
      %v321 = vadd.f32 %v226, %v320
      %322 = vmatprep.mubr.f32.mxu0 0.0
      %323 = vmatmul.mubr.f32.gmra.mxu0 %v165
      %v324 = vpop.f32.mrf.mxu0
      %v325 = vadd.f32 %v222, %v324
      %v326 = vpop.f32.mrf.mxu0
      %v327 = vadd.f32 %v226, %v326
      %328 = vmatprep.mubr.f32.mxu0 0.0
      %329 = vmatmul.mubr.f32.gmra.mxu0 %v166
      %v330 = vpop.f32.mrf.mxu0
      %v331 = vadd.f32 %v222, %v330
      %v332 = vpop.f32.mrf.mxu0
      %v333 = vadd.f32 %v226, %v332
      %334 = vmatprep.mubr.f32.mxu0 0.0
      %335 = vmatmul.mubr.f32.gmra.mxu0 %v167
      %v336 = vpop.f32.mrf.mxu0
      %v337 = vadd.f32 %v222, %v336
      %v338 = vpop.f32.mrf.mxu0
      %v339 = vadd.f32 %v226, %v338
      %340 = vmatprep.mubr.f32.mxu0 0.0
      %341 = vmatmul.mubr.f32.gmra.mxu0 %v168
      %v342 = vpop.f32.mrf.mxu0
      %v343 = vadd.f32 %v222, %v342
      %v344 = vpop.f32.mrf.mxu0
      %v345 = vadd.f32 %v226, %v344
      %346 = vdwg.mxu0
      %347 = vmatprep.subr.mxu0 0.0
      %348 = vmatpush1.msra.mxu0 %v216
      %349 = vmatprep.subr.mxu0 0.0
      %350 = vmatpush1.msra.mxu0 %v213
      %351 = vmatprep.subr.mxu0 0.0
      %352 = vmatpush1.msra.mxu0 %v210
      %353 = vmatprep.subr.mxu0 0.0
      %354 = vmatpush1.msra.mxu0 %v207
      %355 = vmatprep.subr.mxu0 0.0
      %356 = vmatpush1.msra.mxu0 %v204
      %357 = vmatprep.subr.mxu0 0.0
      %358 = vmatpush1.msra.mxu0 %v201
      %359 = vmatprep.subr.mxu0 0.0
      %360 = vmatpush1.msra.mxu0 %v198
      %361 = vmatprep.subr.mxu0 0.0
      %362 = vmatpush1.msra.mxu0 %v195
      %363 = vmatprep.subr.mxu0 0.0
      %364 = vmatpush1.msra.mxu0 %v192
      %365 = vmatprep.subr.mxu0 0.0
      %366 = vmatpush1.msra.mxu0 %v189
      %367 = vmatprep.subr.mxu0 0.0
      %368 = vmatpush1.msra.mxu0 %v186
      %369 = vmatprep.subr.mxu0 0.0
      %370 = vmatpush1.msra.mxu0 %v183
      %371 = vmatprep.subr.mxu0 0.0
      %372 = vmatpush1.msra.mxu0 %v180
      %373 = vmatprep.subr.mxu0 0.0
      %374 = vmatpush1.msra.mxu0 %v177
      %375 = vmatprep.subr.mxu0 0.0
      %376 = vmatpush1.msra.mxu0 %v174
      %377 = vmatprep.subr.mxu0 0.0
      %378 = vmatpush1.msra.mxu0 %v171
      %379 = vmatprep.subr.mxu0 0.0
      %380 = vmatpush2.msra.mxu0 0.0
      %381 = vmatprep.subr.mxu0 0.0
      %382 = vmatpush2.msra.mxu0 0.0
      %383 = vmatprep.subr.mxu0 0.0
      %384 = vmatpush2.msra.mxu0 0.0
      %385 = vmatprep.subr.mxu0 0.0
      %386 = vmatpush2.msra.mxu0 0.0
      %387 = vmatprep.subr.mxu0 0.0
      %388 = vmatpush2.msra.mxu0 0.0
      %389 = vmatprep.subr.mxu0 0.0
      %390 = vmatpush2.msra.mxu0 0.0
      %391 = vmatprep.subr.mxu0 0.0
      %392 = vmatpush2.msra.mxu0 0.0
      %393 = vmatprep.subr.mxu0 0.0
      %394 = vmatpush2.msra.mxu0 0.0
      %395 = vmatprep.subr.mxu0 0.0
      %396 = vmatpush2.msra.mxu0 0.0
      %397 = vmatprep.subr.mxu0 0.0
      %398 = vmatpush2.msra.mxu0 0.0
      %399 = vmatprep.subr.mxu0 0.0
      %400 = vmatpush2.msra.mxu0 0.0
      %401 = vmatprep.subr.mxu0 0.0
      %402 = vmatpush2.msra.mxu0 0.0
      %403 = vmatprep.subr.mxu0 0.0
      %404 = vmatpush2.msra.mxu0 0.0
      %405 = vmatprep.subr.mxu0 0.0
      %406 = vmatpush2.msra.mxu0 0.0
      %407 = vmatprep.subr.mxu0 0.0
      %408 = vmatpush2.msra.mxu0 0.0
      %409 = vmatprep.subr.mxu0 0.0
      %410 = vmatpush2.msra.mxu0 0.0
      %411 = vmatprep.mubr.f32.mxu0 0.0
      %412 = vmatmul.mubr.f32.gmra.mxu0 %v161
      %v413 = vpop.f32.mrf.mxu0
      %v414 = vadd.f32 %v230, %v413
      %v415 = vpop.f32.mrf.mxu0
      %416 = vmatprep.mubr.f32.mxu0 0.0
      %417 = vmatmul.mubr.f32.gmra.mxu0 %v162
      %v418 = vpop.f32.mrf.mxu0
      %v419 = vadd.f32 %v230, %v418
      %v420 = vpop.f32.mrf.mxu0
      %421 = vmatprep.mubr.f32.mxu0 0.0
      %422 = vmatmul.mubr.f32.gmra.mxu0 %v163
      %v423 = vpop.f32.mrf.mxu0
      %v424 = vadd.f32 %v230, %v423
      %v425 = vpop.f32.mrf.mxu0
      %426 = vmatprep.mubr.f32.mxu0 0.0
      %427 = vmatmul.mubr.f32.gmra.mxu0 %v164
      %v428 = vpop.f32.mrf.mxu0
      %v429 = vadd.f32 %v230, %v428
      %v430 = vpop.f32.mrf.mxu0
      %431 = vmatprep.mubr.f32.mxu0 0.0
      %432 = vmatmul.mubr.f32.gmra.mxu0 %v165
      %v433 = vpop.f32.mrf.mxu0
      %v434 = vadd.f32 %v230, %v433
      %v435 = vpop.f32.mrf.mxu0
      %436 = vmatprep.mubr.f32.mxu0 0.0
      %437 = vmatmul.mubr.f32.gmra.mxu0 %v166
      %v438 = vpop.f32.mrf.mxu0
      %v439 = vadd.f32 %v230, %v438
      %v440 = vpop.f32.mrf.mxu0
      %441 = vmatprep.mubr.f32.mxu0 0.0
      %442 = vmatmul.mubr.f32.gmra.mxu0 %v167
      %v443 = vpop.f32.mrf.mxu0
      %v444 = vadd.f32 %v230, %v443
      %v445 = vpop.f32.mrf.mxu0
      %446 = vmatprep.mubr.f32.mxu0 0.0
      %447 = vmatmul.mubr.f32.gmra.mxu0 %v168
      %v448 = vpop.f32.mrf.mxu0
      %v449 = vadd.f32 %v230, %v448
      %v450 = vpop.f32.mrf.mxu0
      %451 = vdwg.mxu0
      %452 = vst [vmem:[#allocation3] sm:$0xff] %v301
      %453 = vst [vmem:[#allocation3 + $0x8] sm:$0xff] %v303
      %454 = vst [vmem:[#allocation3 + $0x10] sm:$0xff] %v414
      %455 = vst [vmem:[#allocation3 + $0x18] sm:$0xff] %v307
      %456 = vst [vmem:[#allocation3 + $0x20] sm:$0xff] %v309
      %457 = vst [vmem:[#allocation3 + $0x28] sm:$0xff] %v419
      %458 = vst [vmem:[#allocation3 + $0x30] sm:$0xff] %v313
      %459 = vst [vmem:[#allocation3 + $0x38] sm:$0xff] %v315
      %460 = vst [vmem:[#allocation3 + $0x40] sm:$0xff] %v424
      %461 = vst [vmem:[#allocation3 + $0x48] sm:$0xff] %v319
      %462 = vst [vmem:[#allocation3 + $0x50] sm:$0xff] %v321
      %463 = vst [vmem:[#allocation3 + $0x58] sm:$0xff] %v429
      %464 = vst [vmem:[#allocation3 + $0x60] sm:$0xff] %v325
      %465 = vst [vmem:[#allocation3 + $0x68] sm:$0xff] %v327
      %466 = vst [vmem:[#allocation3 + $0x70] sm:$0xff] %v434
      %467 = vst [vmem:[#allocation3 + $0x78] sm:$0xff] %v331
      %468 = vst [vmem:[#allocation3 + $0x80] sm:$0xff] %v333
      %469 = vst [vmem:[#allocation3 + $0x88] sm:$0xff] %v439
      %470 = vst [vmem:[#allocation3 + $0x90] sm:$0xff] %v337
      %471 = vst [vmem:[#allocation3 + $0x98] sm:$0xff] %v339
      %472 = vst [vmem:[#allocation3 + $0xa0] sm:$0xff] %v444
      %473 = vst [vmem:[#allocation3 + $0xa8] sm:$0xff] %v343
      %474 = vst [vmem:[#allocation3 + $0xb0] sm:$0xff] %v345
      %475 = vst [vmem:[#allocation3 + $0xb8] sm:$0xff] %v449
      %s476 = smul.u32 0, 8
      %v477 = vld [vmem:[#allocation2] sm:$0xff]
      %v478 = vld [vmem:[#allocation3] sm:$0xff]
      %v479 = vld [vmem:[#allocation3 + $0x8] sm:$0xff]
      %v480 = vld [vmem:[#allocation3 + $0x10] sm:$0xff]
      %481 = vmatprep.subr.mxu0 %v158
      %482 = vmatpush1.msra.mxu0 %v157
      %483 = vmatprep.subr.mxu0 %v155
      %484 = vmatpush1.msra.mxu0 %v154
      %485 = vmatprep.subr.mxu0 %v152
      %486 = vmatpush1.msra.mxu0 %v151
      %487 = vmatprep.subr.mxu0 %v149
      %488 = vmatpush1.msra.mxu0 %v148
      %489 = vmatprep.subr.mxu0 %v146
      %490 = vmatpush1.msra.mxu0 %v145
      %491 = vmatprep.subr.mxu0 %v143
      %492 = vmatpush1.msra.mxu0 %v142
      %493 = vmatprep.subr.mxu0 %v140
      %494 = vmatpush1.msra.mxu0 %v139
      %495 = vmatprep.subr.mxu0 %v137
      %496 = vmatpush1.msra.mxu0 %v136
      %497 = vmatprep.subr.mxu0 %v134
      %498 = vmatpush1.msra.mxu0 %v133
      %499 = vmatprep.subr.mxu0 %v131
      %500 = vmatpush1.msra.mxu0 %v130
      %501 = vmatprep.subr.mxu0 %v128
      %502 = vmatpush1.msra.mxu0 %v127
      %503 = vmatprep.subr.mxu0 %v125
      %504 = vmatpush1.msra.mxu0 %v124
      %505 = vmatprep.subr.mxu0 %v122
      %506 = vmatpush1.msra.mxu0 %v121
      %507 = vmatprep.subr.mxu0 %v119
      %508 = vmatpush1.msra.mxu0 %v118
      %509 = vmatprep.subr.mxu0 %v116
      %510 = vmatpush1.msra.mxu0 %v115
      %511 = vmatprep.subr.mxu0 %v113
      %512 = vmatpush1.msra.mxu0 %v112
      %513 = vmatprep.subr.mxu0 0.0
      %514 = vmatpush2.msra.mxu0 0.0
      %515 = vmatprep.subr.mxu0 0.0
      %516 = vmatpush2.msra.mxu0 0.0
      %517 = vmatprep.subr.mxu0 0.0
      %518 = vmatpush2.msra.mxu0 0.0
      %519 = vmatprep.subr.mxu0 0.0
      %520 = vmatpush2.msra.mxu0 0.0
      %521 = vmatprep.subr.mxu0 0.0
      %522 = vmatpush2.msra.mxu0 0.0
      %523 = vmatprep.subr.mxu0 0.0
      %524 = vmatpush2.msra.mxu0 0.0
      %525 = vmatprep.subr.mxu0 0.0
      %526 = vmatpush2.msra.mxu0 0.0
      %527 = vmatprep.subr.mxu0 0.0
      %528 = vmatpush2.msra.mxu0 0.0
      %529 = vmatprep.subr.mxu0 0.0
      %530 = vmatpush2.msra.mxu0 0.0
      %531 = vmatprep.subr.mxu0 0.0
      %532 = vmatpush2.msra.mxu0 0.0
      %533 = vmatprep.subr.mxu0 0.0
      %534 = vmatpush2.msra.mxu0 0.0
      %535 = vmatprep.subr.mxu0 0.0
      %536 = vmatpush2.msra.mxu0 0.0
      %537 = vmatprep.subr.mxu0 0.0
      %538 = vmatpush2.msra.mxu0 0.0
      %539 = vmatprep.subr.mxu0 0.0
      %540 = vmatpush2.msra.mxu0 0.0
      %541 = vmatprep.subr.mxu0 0.0
      %542 = vmatpush2.msra.mxu0 0.0
      %543 = vmatprep.subr.mxu0 0.0
      %544 = vmatpush2.msra.mxu0 0.0
      %545 = vmatprep.mubr.f32.mxu0 0.0
      %546 = vmatmul.mubr.f32.gmra.mxu0 %v477
      %v547 = vpop.f32.mrf.mxu0
      %v548 = vadd.f32 0.0, %v547
      %v549 = vpop.f32.mrf.mxu0
      %v550 = vadd.f32 0.0, %v549
      %551 = vdwg.mxu0
      %552 = vmatprep.subr.mxu0 0.0
      %553 = vmatpush1.msra.mxu0 %v159
      %554 = vmatprep.subr.mxu0 0.0
      %555 = vmatpush1.msra.mxu0 %v156
      %556 = vmatprep.subr.mxu0 0.0
      %557 = vmatpush1.msra.mxu0 %v153
      %558 = vmatprep.subr.mxu0 0.0
      %559 = vmatpush1.msra.mxu0 %v150
      %560 = vmatprep.subr.mxu0 0.0
      %561 = vmatpush1.msra.mxu0 %v147
      %562 = vmatprep.subr.mxu0 0.0
      %563 = vmatpush1.msra.mxu0 %v144
      %564 = vmatprep.subr.mxu0 0.0
      %565 = vmatpush1.msra.mxu0 %v141
      %566 = vmatprep.subr.mxu0 0.0
      %567 = vmatpush1.msra.mxu0 %v138
      %568 = vmatprep.subr.mxu0 0.0
      %569 = vmatpush1.msra.mxu0 %v135
      %570 = vmatprep.subr.mxu0 0.0
      %571 = vmatpush1.msra.mxu0 %v132
      %572 = vmatprep.subr.mxu0 0.0
      %573 = vmatpush1.msra.mxu0 %v129
      %574 = vmatprep.subr.mxu0 0.0
      %575 = vmatpush1.msra.mxu0 %v126
      %576 = vmatprep.subr.mxu0 0.0
      %577 = vmatpush1.msra.mxu0 %v123
      %578 = vmatprep.subr.mxu0 0.0
      %579 = vmatpush1.msra.mxu0 %v120
      %580 = vmatprep.subr.mxu0 0.0
      %581 = vmatpush1.msra.mxu0 %v117
      %582 = vmatprep.subr.mxu0 0.0
      %583 = vmatpush1.msra.mxu0 %v114
      %584 = vmatprep.subr.mxu0 0.0
      %585 = vmatpush2.msra.mxu0 0.0
      %586 = vmatprep.subr.mxu0 0.0
      %587 = vmatpush2.msra.mxu0 0.0
      %588 = vmatprep.subr.mxu0 0.0
      %589 = vmatpush2.msra.mxu0 0.0
      %590 = vmatprep.subr.mxu0 0.0
      %591 = vmatpush2.msra.mxu0 0.0
      %592 = vmatprep.subr.mxu0 0.0
      %593 = vmatpush2.msra.mxu0 0.0
      %594 = vmatprep.subr.mxu0 0.0
      %595 = vmatpush2.msra.mxu0 0.0
      %596 = vmatprep.subr.mxu0 0.0
      %597 = vmatpush2.msra.mxu0 0.0
      %598 = vmatprep.subr.mxu0 0.0
      %599 = vmatpush2.msra.mxu0 0.0
      %600 = vmatprep.subr.mxu0 0.0
      %601 = vmatpush2.msra.mxu0 0.0
      %602 = vmatprep.subr.mxu0 0.0
      %603 = vmatpush2.msra.mxu0 0.0
      %604 = vmatprep.subr.mxu0 0.0
      %605 = vmatpush2.msra.mxu0 0.0
      %606 = vmatprep.subr.mxu0 0.0
      %607 = vmatpush2.msra.mxu0 0.0
      %608 = vmatprep.subr.mxu0 0.0
      %609 = vmatpush2.msra.mxu0 0.0
      %610 = vmatprep.subr.mxu0 0.0
      %611 = vmatpush2.msra.mxu0 0.0
      %612 = vmatprep.subr.mxu0 0.0
      %613 = vmatpush2.msra.mxu0 0.0
      %614 = vmatprep.subr.mxu0 0.0
      %615 = vmatpush2.msra.mxu0 0.0
      %616 = vmatprep.mubr.f32.mxu0 0.0
      %617 = vmatmul.mubr.f32.gmra.mxu0 %v477
      %v618 = vpop.f32.mrf.mxu0
      %v619 = vadd.f32 0.0, %v618
      %v620 = vpop.f32.mrf.mxu0
      %621 = vdwg.mxu0
      %v622 = vadd.f32 %v478, %v548
      %v623 = vxor.u32 %v622, 2147483648
      %v624 = vmul.f32 %v623, 1.442695
      %v625 = vpow.pop %v624
      %v626 = vadd.f32 %v625, 1.0
      %v627 = vrcp.pop %v626
      %v628 = vmul.f32 1.0, %v627
      %v629 = vadd.f32 %v479, %v550
      %v630 = vxor.u32 %v629, 2147483648
      %v631 = vmul.f32 %v630, 1.442695
      %v632 = vpow.pop %v631
      %v633 = vadd.f32 %v632, 1.0
      %v634 = vrcp.pop %v633
      %v635 = vmul.f32 1.0, %v634
      %v637 = vlaneseq
      %v638 = vshrl.u32 %v637, 7
      %v639 = vsub.s32 0, %v638
      %v640 = vrot.slane %v160, %v639
      %v642 = vadd.f32 %v619, %v640
      %v643 = vmul.f32 %v628, %v642
      %v644 = vadd.f32 %v480, %v643
      %v645 = vtanh.pop %v644
      %v646 = vsub.f32 %v477, %v645
      %v647 = vmul.f32 %v635, %v646
      %v648 = vadd.f32 %v645, %v647
      %v649 = vstv %s476
      %vm650 = vcmp.lt.s32.totalorder %v649, %v111
      %v651 = vsel %vm650, 1, 0
      %652 = vset.pattern.permute.xlu0 0
      %653 = vperm.xlu0 %652, %v651
      %v654 = vpop.permute.xlu0 %653
      %vm655 = vcmp.eq.s32.totalorder %v654, 1
      %v656 = vsel %vm655, %v648, %v477
      %s657 = scalar_lea.vmem [#allocation3], 24
      %v658 = vld [vmem:[%s657] sm:$0xff]
      %v659 = vld [vmem:[%s657 + $0x8] sm:$0xff]
      %v660 = vld [vmem:[%s657 + $0x10] sm:$0xff]
      %661 = vmatprep.subr.mxu0 %v158
      %662 = vmatpush1.msra.mxu0 %v157
      %663 = vmatprep.subr.mxu0 %v155
      %664 = vmatpush1.msra.mxu0 %v154
      %665 = vmatprep.subr.mxu0 %v152
      %666 = vmatpush1.msra.mxu0 %v151
      %667 = vmatprep.subr.mxu0 %v149
      %668 = vmatpush1.msra.mxu0 %v148
      %669 = vmatprep.subr.mxu0 %v146
      %670 = vmatpush1.msra.mxu0 %v145
      %671 = vmatprep.subr.mxu0 %v143
      %672 = vmatpush1.msra.mxu0 %v142
      %673 = vmatprep.subr.mxu0 %v140
      %674 = vmatpush1.msra.mxu0 %v139
      %675 = vmatprep.subr.mxu0 %v137
      %676 = vmatpush1.msra.mxu0 %v136
      %677 = vmatprep.subr.mxu0 %v134
      %678 = vmatpush1.msra.mxu0 %v133
      %679 = vmatprep.subr.mxu0 %v131
      %680 = vmatpush1.msra.mxu0 %v130
      %681 = vmatprep.subr.mxu0 %v128
      %682 = vmatpush1.msra.mxu0 %v127
      %683 = vmatprep.subr.mxu0 %v125
      %684 = vmatpush1.msra.mxu0 %v124
      %685 = vmatprep.subr.mxu0 %v122
      %686 = vmatpush1.msra.mxu0 %v121
      %687 = vmatprep.subr.mxu0 %v119
      %688 = vmatpush1.msra.mxu0 %v118
      %689 = vmatprep.subr.mxu0 %v116
      %690 = vmatpush1.msra.mxu0 %v115
      %691 = vmatprep.subr.mxu0 %v113
      %692 = vmatpush1.msra.mxu0 %v112
      %693 = vmatprep.subr.mxu0 0.0
      %694 = vmatpush2.msra.mxu0 0.0
      %695 = vmatprep.subr.mxu0 0.0
      %696 = vmatpush2.msra.mxu0 0.0
      %697 = vmatprep.subr.mxu0 0.0
      %698 = vmatpush2.msra.mxu0 0.0
      %699 = vmatprep.subr.mxu0 0.0
      %700 = vmatpush2.msra.mxu0 0.0
      %701 = vmatprep.subr.mxu0 0.0
      %702 = vmatpush2.msra.mxu0 0.0
      %703 = vmatprep.subr.mxu0 0.0
      %704 = vmatpush2.msra.mxu0 0.0
      %705 = vmatprep.subr.mxu0 0.0
      %706 = vmatpush2.msra.mxu0 0.0
      %707 = vmatprep.subr.mxu0 0.0
      %708 = vmatpush2.msra.mxu0 0.0
      %709 = vmatprep.subr.mxu0 0.0
      %710 = vmatpush2.msra.mxu0 0.0
      %711 = vmatprep.subr.mxu0 0.0
      %712 = vmatpush2.msra.mxu0 0.0
      %713 = vmatprep.subr.mxu0 0.0
      %714 = vmatpush2.msra.mxu0 0.0
      %715 = vmatprep.subr.mxu0 0.0
      %716 = vmatpush2.msra.mxu0 0.0
      %717 = vmatprep.subr.mxu0 0.0
      %718 = vmatpush2.msra.mxu0 0.0
      %719 = vmatprep.subr.mxu0 0.0
      %720 = vmatpush2.msra.mxu0 0.0
      %721 = vmatprep.subr.mxu0 0.0
      %722 = vmatpush2.msra.mxu0 0.0
      %723 = vmatprep.subr.mxu0 0.0
      %724 = vmatpush2.msra.mxu0 0.0
      %725 = vmatprep.mubr.f32.mxu0 0.0
      %726 = vmatmul.mubr.f32.gmra.mxu0 %v656
      %v727 = vpop.f32.mrf.mxu0
      %v728 = vadd.f32 0.0, %v727
      %v729 = vpop.f32.mrf.mxu0
      %v730 = vadd.f32 0.0, %v729
      %731 = vdwg.mxu0
      %732 = vmatprep.subr.mxu0 0.0
      %733 = vmatpush1.msra.mxu0 %v159
      %734 = vmatprep.subr.mxu0 0.0
      %735 = vmatpush1.msra.mxu0 %v156
      %736 = vmatprep.subr.mxu0 0.0
      %737 = vmatpush1.msra.mxu0 %v153
      %738 = vmatprep.subr.mxu0 0.0
      %739 = vmatpush1.msra.mxu0 %v150
      %740 = vmatprep.subr.mxu0 0.0
      %741 = vmatpush1.msra.mxu0 %v147
      %742 = vmatprep.subr.mxu0 0.0
      %743 = vmatpush1.msra.mxu0 %v144
      %744 = vmatprep.subr.mxu0 0.0
      %745 = vmatpush1.msra.mxu0 %v141
      %746 = vmatprep.subr.mxu0 0.0
      %747 = vmatpush1.msra.mxu0 %v138
      %748 = vmatprep.subr.mxu0 0.0
      %749 = vmatpush1.msra.mxu0 %v135
      %750 = vmatprep.subr.mxu0 0.0
      %751 = vmatpush1.msra.mxu0 %v132
      %752 = vmatprep.subr.mxu0 0.0
      %753 = vmatpush1.msra.mxu0 %v129
      %754 = vmatprep.subr.mxu0 0.0
      %755 = vmatpush1.msra.mxu0 %v126
      %756 = vmatprep.subr.mxu0 0.0
      %757 = vmatpush1.msra.mxu0 %v123
      %758 = vmatprep.subr.mxu0 0.0
      %759 = vmatpush1.msra.mxu0 %v120
      %760 = vmatprep.subr.mxu0 0.0
      %761 = vmatpush1.msra.mxu0 %v117
      %762 = vmatprep.subr.mxu0 0.0
      %763 = vmatpush1.msra.mxu0 %v114
      %764 = vmatprep.subr.mxu0 0.0
      %765 = vmatpush2.msra.mxu0 0.0
      %766 = vmatprep.subr.mxu0 0.0
      %767 = vmatpush2.msra.mxu0 0.0
      %768 = vmatprep.subr.mxu0 0.0
      %769 = vmatpush2.msra.mxu0 0.0
      %770 = vmatprep.subr.mxu0 0.0
      %771 = vmatpush2.msra.mxu0 0.0
      %772 = vmatprep.subr.mxu0 0.0
      %773 = vmatpush2.msra.mxu0 0.0
      %774 = vmatprep.subr.mxu0 0.0
      %775 = vmatpush2.msra.mxu0 0.0
      %776 = vmatprep.subr.mxu0 0.0
      %777 = vmatpush2.msra.mxu0 0.0
      %778 = vmatprep.subr.mxu0 0.0
      %779 = vmatpush2.msra.mxu0 0.0
      %780 = vmatprep.subr.mxu0 0.0
      %781 = vmatpush2.msra.mxu0 0.0
      %782 = vmatprep.subr.mxu0 0.0
      %783 = vmatpush2.msra.mxu0 0.0
      %784 = vmatprep.subr.mxu0 0.0
      %785 = vmatpush2.msra.mxu0 0.0
      %786 = vmatprep.subr.mxu0 0.0
      %787 = vmatpush2.msra.mxu0 0.0
      %788 = vmatprep.subr.mxu0 0.0
      %789 = vmatpush2.msra.mxu0 0.0
      %790 = vmatprep.subr.mxu0 0.0
      %791 = vmatpush2.msra.mxu0 0.0
      %792 = vmatprep.subr.mxu0 0.0
      %793 = vmatpush2.msra.mxu0 0.0
      %794 = vmatprep.subr.mxu0 0.0
      %795 = vmatpush2.msra.mxu0 0.0
      %796 = vmatprep.mubr.f32.mxu0 0.0
      %797 = vmatmul.mubr.f32.gmra.mxu0 %v656
      %v798 = vpop.f32.mrf.mxu0
      %v799 = vadd.f32 0.0, %v798
      %v800 = vpop.f32.mrf.mxu0
      %801 = vdwg.mxu0
      %v802 = vadd.f32 %v658, %v728
      %v803 = vxor.u32 %v802, 2147483648
      %v804 = vmul.f32 %v803, 1.442695
      %v805 = vpow.pop %v804
      %v806 = vadd.f32 %v805, 1.0
      %v807 = vrcp.pop %v806
      %v808 = vmul.f32 1.0, %v807
      %v809 = vadd.f32 %v659, %v730
      %v810 = vxor.u32 %v809, 2147483648
      %v811 = vmul.f32 %v810, 1.442695
      %v812 = vpow.pop %v811
      %v813 = vadd.f32 %v812, 1.0
      %v814 = vrcp.pop %v813
      %v815 = vmul.f32 1.0, %v814
      %v816 = vadd.f32 %v799, %v640
      %v817 = vmul.f32 %v808, %v816
      %v818 = vadd.f32 %v660, %v817
      %v819 = vtanh.pop %v818
      %v820 = vsub.f32 %v656, %v819
      %v821 = vmul.f32 %v815, %v820
      %v822 = vadd.f32 %v819, %v821
      %s823 = sadd.s32 %s476, 1
      %v824 = vstv %s823
      %vm825 = vcmp.lt.s32.totalorder %v824, %v111
      %v826 = vsel %vm825, 1, 0
      %827 = vset.pattern.permute.xlu0 0
      %828 = vperm.xlu0 %827, %v826
      %v829 = vpop.permute.xlu0 %828
      %vm830 = vcmp.eq.s32.totalorder %v829, 1
      %v831 = vsel %vm830, %v822, %v656
      %s832 = scalar_lea.vmem [#allocation3], 48
      %v833 = vld [vmem:[%s832] sm:$0xff]
      %v834 = vld [vmem:[%s832 + $0x8] sm:$0xff]
      %v835 = vld [vmem:[%s832 + $0x10] sm:$0xff]
      %836 = vmatprep.subr.mxu0 %v158
      %837 = vmatpush1.msra.mxu0 %v157
      %838 = vmatprep.subr.mxu0 %v155
      %839 = vmatpush1.msra.mxu0 %v154
      %840 = vmatprep.subr.mxu0 %v152
      %841 = vmatpush1.msra.mxu0 %v151
      %842 = vmatprep.subr.mxu0 %v149
      %843 = vmatpush1.msra.mxu0 %v148
      %844 = vmatprep.subr.mxu0 %v146
      %845 = vmatpush1.msra.mxu0 %v145
      %846 = vmatprep.subr.mxu0 %v143
      %847 = vmatpush1.msra.mxu0 %v142
      %848 = vmatprep.subr.mxu0 %v140
      %849 = vmatpush1.msra.mxu0 %v139
      %850 = vmatprep.subr.mxu0 %v137
      %851 = vmatpush1.msra.mxu0 %v136
      %852 = vmatprep.subr.mxu0 %v134
      %853 = vmatpush1.msra.mxu0 %v133
      %854 = vmatprep.subr.mxu0 %v131
      %855 = vmatpush1.msra.mxu0 %v130
      %856 = vmatprep.subr.mxu0 %v128
      %857 = vmatpush1.msra.mxu0 %v127
      %858 = vmatprep.subr.mxu0 %v125
      %859 = vmatpush1.msra.mxu0 %v124
      %860 = vmatprep.subr.mxu0 %v122
      %861 = vmatpush1.msra.mxu0 %v121
      %862 = vmatprep.subr.mxu0 %v119
      %863 = vmatpush1.msra.mxu0 %v118
      %864 = vmatprep.subr.mxu0 %v116
      %865 = vmatpush1.msra.mxu0 %v115
      %866 = vmatprep.subr.mxu0 %v113
      %867 = vmatpush1.msra.mxu0 %v112
      %868 = vmatprep.subr.mxu0 0.0
      %869 = vmatpush2.msra.mxu0 0.0
      %870 = vmatprep.subr.mxu0 0.0
      %871 = vmatpush2.msra.mxu0 0.0
      %872 = vmatprep.subr.mxu0 0.0
      %873 = vmatpush2.msra.mxu0 0.0
      %874 = vmatprep.subr.mxu0 0.0
      %875 = vmatpush2.msra.mxu0 0.0
      %876 = vmatprep.subr.mxu0 0.0
      %877 = vmatpush2.msra.mxu0 0.0
      %878 = vmatprep.subr.mxu0 0.0
      %879 = vmatpush2.msra.mxu0 0.0
      %880 = vmatprep.subr.mxu0 0.0
      %881 = vmatpush2.msra.mxu0 0.0
      %882 = vmatprep.subr.mxu0 0.0
      %883 = vmatpush2.msra.mxu0 0.0
      %884 = vmatprep.subr.mxu0 0.0
      %885 = vmatpush2.msra.mxu0 0.0
      %886 = vmatprep.subr.mxu0 0.0
      %887 = vmatpush2.msra.mxu0 0.0
      %888 = vmatprep.subr.mxu0 0.0
      %889 = vmatpush2.msra.mxu0 0.0
      %890 = vmatprep.subr.mxu0 0.0
      %891 = vmatpush2.msra.mxu0 0.0
      %892 = vmatprep.subr.mxu0 0.0
      %893 = vmatpush2.msra.mxu0 0.0
      %894 = vmatprep.subr.mxu0 0.0
      %895 = vmatpush2.msra.mxu0 0.0
      %896 = vmatprep.subr.mxu0 0.0
      %897 = vmatpush2.msra.mxu0 0.0
      %898 = vmatprep.subr.mxu0 0.0
      %899 = vmatpush2.msra.mxu0 0.0
      %900 = vmatprep.mubr.f32.mxu0 0.0
      %901 = vmatmul.mubr.f32.gmra.mxu0 %v831
      %v902 = vpop.f32.mrf.mxu0
      %v903 = vadd.f32 0.0, %v902
      %v904 = vpop.f32.mrf.mxu0
      %v905 = vadd.f32 0.0, %v904
      %906 = vdwg.mxu0
      %907 = vmatprep.subr.mxu0 0.0
      %908 = vmatpush1.msra.mxu0 %v159
      %909 = vmatprep.subr.mxu0 0.0
      %910 = vmatpush1.msra.mxu0 %v156
      %911 = vmatprep.subr.mxu0 0.0
      %912 = vmatpush1.msra.mxu0 %v153
      %913 = vmatprep.subr.mxu0 0.0
      %914 = vmatpush1.msra.mxu0 %v150
      %915 = vmatprep.subr.mxu0 0.0
      %916 = vmatpush1.msra.mxu0 %v147
      %917 = vmatprep.subr.mxu0 0.0
      %918 = vmatpush1.msra.mxu0 %v144
      %919 = vmatprep.subr.mxu0 0.0
      %920 = vmatpush1.msra.mxu0 %v141
      %921 = vmatprep.subr.mxu0 0.0
      %922 = vmatpush1.msra.mxu0 %v138
      %923 = vmatprep.subr.mxu0 0.0
      %924 = vmatpush1.msra.mxu0 %v135
      %925 = vmatprep.subr.mxu0 0.0
      %926 = vmatpush1.msra.mxu0 %v132
      %927 = vmatprep.subr.mxu0 0.0
      %928 = vmatpush1.msra.mxu0 %v129
      %929 = vmatprep.subr.mxu0 0.0
      %930 = vmatpush1.msra.mxu0 %v126
      %931 = vmatprep.subr.mxu0 0.0
      %932 = vmatpush1.msra.mxu0 %v123
      %933 = vmatprep.subr.mxu0 0.0
      %934 = vmatpush1.msra.mxu0 %v120
      %935 = vmatprep.subr.mxu0 0.0
      %936 = vmatpush1.msra.mxu0 %v117
      %937 = vmatprep.subr.mxu0 0.0
      %938 = vmatpush1.msra.mxu0 %v114
      %939 = vmatprep.subr.mxu0 0.0
      %940 = vmatpush2.msra.mxu0 0.0
      %941 = vmatprep.subr.mxu0 0.0
      %942 = vmatpush2.msra.mxu0 0.0
      %943 = vmatprep.subr.mxu0 0.0
      %944 = vmatpush2.msra.mxu0 0.0
      %945 = vmatprep.subr.mxu0 0.0
      %946 = vmatpush2.msra.mxu0 0.0
      %947 = vmatprep.subr.mxu0 0.0
      %948 = vmatpush2.msra.mxu0 0.0
      %949 = vmatprep.subr.mxu0 0.0
      %950 = vmatpush2.msra.mxu0 0.0
      %951 = vmatprep.subr.mxu0 0.0
      %952 = vmatpush2.msra.mxu0 0.0
      %953 = vmatprep.subr.mxu0 0.0
      %954 = vmatpush2.msra.mxu0 0.0
      %955 = vmatprep.subr.mxu0 0.0
      %956 = vmatpush2.msra.mxu0 0.0
      %957 = vmatprep.subr.mxu0 0.0
      %958 = vmatpush2.msra.mxu0 0.0
      %959 = vmatprep.subr.mxu0 0.0
      %960 = vmatpush2.msra.mxu0 0.0
      %961 = vmatprep.subr.mxu0 0.0
      %962 = vmatpush2.msra.mxu0 0.0
      %963 = vmatprep.subr.mxu0 0.0
      %964 = vmatpush2.msra.mxu0 0.0
      %965 = vmatprep.subr.mxu0 0.0
      %966 = vmatpush2.msra.mxu0 0.0
      %967 = vmatprep.subr.mxu0 0.0
      %968 = vmatpush2.msra.mxu0 0.0
      %969 = vmatprep.subr.mxu0 0.0
      %970 = vmatpush2.msra.mxu0 0.0
      %971 = vmatprep.mubr.f32.mxu0 0.0
      %972 = vmatmul.mubr.f32.gmra.mxu0 %v831
      %v973 = vpop.f32.mrf.mxu0
      %v974 = vadd.f32 0.0, %v973
      %v975 = vpop.f32.mrf.mxu0
      %976 = vdwg.mxu0
      %v977 = vadd.f32 %v833, %v903
      %v978 = vxor.u32 %v977, 2147483648
      %v979 = vmul.f32 %v978, 1.442695
      %v980 = vpow.pop %v979
      %v981 = vadd.f32 %v980, 1.0
      %v982 = vrcp.pop %v981
      %v983 = vmul.f32 1.0, %v982
      %v984 = vadd.f32 %v834, %v905
      %v985 = vxor.u32 %v984, 2147483648
      %v986 = vmul.f32 %v985, 1.442695
      %v987 = vpow.pop %v986
      %v988 = vadd.f32 %v987, 1.0
      %v989 = vrcp.pop %v988
      %v990 = vmul.f32 1.0, %v989
      %v991 = vadd.f32 %v974, %v640
      %v992 = vmul.f32 %v983, %v991
      %v993 = vadd.f32 %v835, %v992
      %v994 = vtanh.pop %v993
      %v995 = vsub.f32 %v831, %v994
      %v996 = vmul.f32 %v990, %v995
      %v997 = vadd.f32 %v994, %v996
      %s998 = sadd.s32 %s476, 2
      %v999 = vstv %s998
      %vm1000 = vcmp.lt.s32.totalorder %v999, %v111
      %v1001 = vsel %vm1000, 1, 0
      %1002 = vset.pattern.permute.xlu0 0
      %1003 = vperm.xlu0 %1002, %v1001
      %v1004 = vpop.permute.xlu0 %1003
      %vm1005 = vcmp.eq.s32.totalorder %v1004, 1
      %v1006 = vsel %vm1005, %v997, %v831
      %s1007 = scalar_lea.vmem [#allocation3], 72
      %v1008 = vld [vmem:[%s1007] sm:$0xff]
      %v1009 = vld [vmem:[%s1007 + $0x8] sm:$0xff]
      %v1010 = vld [vmem:[%s1007 + $0x10] sm:$0xff]
      %1011 = vmatprep.subr.mxu0 %v158
      %1012 = vmatpush1.msra.mxu0 %v157
      %1013 = vmatprep.subr.mxu0 %v155
      %1014 = vmatpush1.msra.mxu0 %v154
      %1015 = vmatprep.subr.mxu0 %v152
      %1016 = vmatpush1.msra.mxu0 %v151
      %1017 = vmatprep.subr.mxu0 %v149
      %1018 = vmatpush1.msra.mxu0 %v148
      %1019 = vmatprep.subr.mxu0 %v146
      %1020 = vmatpush1.msra.mxu0 %v145
      %1021 = vmatprep.subr.mxu0 %v143
      %1022 = vmatpush1.msra.mxu0 %v142
      %1023 = vmatprep.subr.mxu0 %v140
      %1024 = vmatpush1.msra.mxu0 %v139
      %1025 = vmatprep.subr.mxu0 %v137
      %1026 = vmatpush1.msra.mxu0 %v136
      %1027 = vmatprep.subr.mxu0 %v134
      %1028 = vmatpush1.msra.mxu0 %v133
      %1029 = vmatprep.subr.mxu0 %v131
      %1030 = vmatpush1.msra.mxu0 %v130
      %1031 = vmatprep.subr.mxu0 %v128
      %1032 = vmatpush1.msra.mxu0 %v127
      %1033 = vmatprep.subr.mxu0 %v125
      %1034 = vmatpush1.msra.mxu0 %v124
      %1035 = vmatprep.subr.mxu0 %v122
      %1036 = vmatpush1.msra.mxu0 %v121
      %1037 = vmatprep.subr.mxu0 %v119
      %1038 = vmatpush1.msra.mxu0 %v118
      %1039 = vmatprep.subr.mxu0 %v116
      %1040 = vmatpush1.msra.mxu0 %v115
      %1041 = vmatprep.subr.mxu0 %v113
      %1042 = vmatpush1.msra.mxu0 %v112
      %1043 = vmatprep.subr.mxu0 0.0
      %1044 = vmatpush2.msra.mxu0 0.0
      %1045 = vmatprep.subr.mxu0 0.0
      %1046 = vmatpush2.msra.mxu0 0.0
      %1047 = vmatprep.subr.mxu0 0.0
      %1048 = vmatpush2.msra.mxu0 0.0
      %1049 = vmatprep.subr.mxu0 0.0
      %1050 = vmatpush2.msra.mxu0 0.0
      %1051 = vmatprep.subr.mxu0 0.0
      %1052 = vmatpush2.msra.mxu0 0.0
      %1053 = vmatprep.subr.mxu0 0.0
      %1054 = vmatpush2.msra.mxu0 0.0
      %1055 = vmatprep.subr.mxu0 0.0
      %1056 = vmatpush2.msra.mxu0 0.0
      %1057 = vmatprep.subr.mxu0 0.0
      %1058 = vmatpush2.msra.mxu0 0.0
      %1059 = vmatprep.subr.mxu0 0.0
      %1060 = vmatpush2.msra.mxu0 0.0
      %1061 = vmatprep.subr.mxu0 0.0
      %1062 = vmatpush2.msra.mxu0 0.0
      %1063 = vmatprep.subr.mxu0 0.0
      %1064 = vmatpush2.msra.mxu0 0.0
      %1065 = vmatprep.subr.mxu0 0.0
      %1066 = vmatpush2.msra.mxu0 0.0
      %1067 = vmatprep.subr.mxu0 0.0
      %1068 = vmatpush2.msra.mxu0 0.0
      %1069 = vmatprep.subr.mxu0 0.0
      %1070 = vmatpush2.msra.mxu0 0.0
      %1071 = vmatprep.subr.mxu0 0.0
      %1072 = vmatpush2.msra.mxu0 0.0
      %1073 = vmatprep.subr.mxu0 0.0
      %1074 = vmatpush2.msra.mxu0 0.0
      %1075 = vmatprep.mubr.f32.mxu0 0.0
      %1076 = vmatmul.mubr.f32.gmra.mxu0 %v1006
      %v1077 = vpop.f32.mrf.mxu0
      %v1078 = vadd.f32 0.0, %v1077
      %v1079 = vpop.f32.mrf.mxu0
      %v1080 = vadd.f32 0.0, %v1079
      %1081 = vdwg.mxu0
      %1082 = vmatprep.subr.mxu0 0.0
      %1083 = vmatpush1.msra.mxu0 %v159
      %1084 = vmatprep.subr.mxu0 0.0
      %1085 = vmatpush1.msra.mxu0 %v156
      %1086 = vmatprep.subr.mxu0 0.0
      %1087 = vmatpush1.msra.mxu0 %v153
      %1088 = vmatprep.subr.mxu0 0.0
      %1089 = vmatpush1.msra.mxu0 %v150
      %1090 = vmatprep.subr.mxu0 0.0
      %1091 = vmatpush1.msra.mxu0 %v147
      %1092 = vmatprep.subr.mxu0 0.0
      %1093 = vmatpush1.msra.mxu0 %v144
      %1094 = vmatprep.subr.mxu0 0.0
      %1095 = vmatpush1.msra.mxu0 %v141
      %1096 = vmatprep.subr.mxu0 0.0
      %1097 = vmatpush1.msra.mxu0 %v138
      %1098 = vmatprep.subr.mxu0 0.0
      %1099 = vmatpush1.msra.mxu0 %v135
      %1100 = vmatprep.subr.mxu0 0.0
      %1101 = vmatpush1.msra.mxu0 %v132
      %1102 = vmatprep.subr.mxu0 0.0
      %1103 = vmatpush1.msra.mxu0 %v129
      %1104 = vmatprep.subr.mxu0 0.0
      %1105 = vmatpush1.msra.mxu0 %v126
      %1106 = vmatprep.subr.mxu0 0.0
      %1107 = vmatpush1.msra.mxu0 %v123
      %1108 = vmatprep.subr.mxu0 0.0
      %1109 = vmatpush1.msra.mxu0 %v120
      %1110 = vmatprep.subr.mxu0 0.0
      %1111 = vmatpush1.msra.mxu0 %v117
      %1112 = vmatprep.subr.mxu0 0.0
      %1113 = vmatpush1.msra.mxu0 %v114
      %1114 = vmatprep.subr.mxu0 0.0
      %1115 = vmatpush2.msra.mxu0 0.0
      %1116 = vmatprep.subr.mxu0 0.0
      %1117 = vmatpush2.msra.mxu0 0.0
      %1118 = vmatprep.subr.mxu0 0.0
      %1119 = vmatpush2.msra.mxu0 0.0
      %1120 = vmatprep.subr.mxu0 0.0
      %1121 = vmatpush2.msra.mxu0 0.0
      %1122 = vmatprep.subr.mxu0 0.0
      %1123 = vmatpush2.msra.mxu0 0.0
      %1124 = vmatprep.subr.mxu0 0.0
      %1125 = vmatpush2.msra.mxu0 0.0
      %1126 = vmatprep.subr.mxu0 0.0
      %1127 = vmatpush2.msra.mxu0 0.0
      %1128 = vmatprep.subr.mxu0 0.0
      %1129 = vmatpush2.msra.mxu0 0.0
      %1130 = vmatprep.subr.mxu0 0.0
      %1131 = vmatpush2.msra.mxu0 0.0
      %1132 = vmatprep.subr.mxu0 0.0
      %1133 = vmatpush2.msra.mxu0 0.0
      %1134 = vmatprep.subr.mxu0 0.0
      %1135 = vmatpush2.msra.mxu0 0.0
      %1136 = vmatprep.subr.mxu0 0.0
      %1137 = vmatpush2.msra.mxu0 0.0
      %1138 = vmatprep.subr.mxu0 0.0
      %1139 = vmatpush2.msra.mxu0 0.0
      %1140 = vmatprep.subr.mxu0 0.0
      %1141 = vmatpush2.msra.mxu0 0.0
      %1142 = vmatprep.subr.mxu0 0.0
      %1143 = vmatpush2.msra.mxu0 0.0
      %1144 = vmatprep.subr.mxu0 0.0
      %1145 = vmatpush2.msra.mxu0 0.0
      %1146 = vmatprep.mubr.f32.mxu0 0.0
      %1147 = vmatmul.mubr.f32.gmra.mxu0 %v1006
      %v1148 = vpop.f32.mrf.mxu0
      %v1149 = vadd.f32 0.0, %v1148
      %v1150 = vpop.f32.mrf.mxu0
      %1151 = vdwg.mxu0
      %v1152 = vadd.f32 %v1008, %v1078
      %v1153 = vxor.u32 %v1152, 2147483648
      %v1154 = vmul.f32 %v1153, 1.442695
      %v1155 = vpow.pop %v1154
      %v1156 = vadd.f32 %v1155, 1.0
      %v1157 = vrcp.pop %v1156
      %v1158 = vmul.f32 1.0, %v1157
      %v1159 = vadd.f32 %v1009, %v1080
      %v1160 = vxor.u32 %v1159, 2147483648
      %v1161 = vmul.f32 %v1160, 1.442695
      %v1162 = vpow.pop %v1161
      %v1163 = vadd.f32 %v1162, 1.0
      %v1164 = vrcp.pop %v1163
      %v1165 = vmul.f32 1.0, %v1164
      %v1166 = vadd.f32 %v1149, %v640
      %v1167 = vmul.f32 %v1158, %v1166
      %v1168 = vadd.f32 %v1010, %v1167
      %v1169 = vtanh.pop %v1168
      %v1170 = vsub.f32 %v1006, %v1169
      %v1171 = vmul.f32 %v1165, %v1170
      %v1172 = vadd.f32 %v1169, %v1171
      %s1173 = sadd.s32 %s476, 3
      %v1174 = vstv %s1173
      %vm1175 = vcmp.lt.s32.totalorder %v1174, %v111
      %v1176 = vsel %vm1175, 1, 0
      %1177 = vset.pattern.permute.xlu0 0
      %1178 = vperm.xlu0 %1177, %v1176
      %v1179 = vpop.permute.xlu0 %1178
      %vm1180 = vcmp.eq.s32.totalorder %v1179, 1
      %v1181 = vsel %vm1180, %v1172, %v1006
      %s1182 = scalar_lea.vmem [#allocation3], 96
      %v1183 = vld [vmem:[%s1182] sm:$0xff]
      %v1184 = vld [vmem:[%s1182 + $0x8] sm:$0xff]
      %v1185 = vld [vmem:[%s1182 + $0x10] sm:$0xff]
      %1186 = vmatprep.subr.mxu0 %v158
      %1187 = vmatpush1.msra.mxu0 %v157
      %1188 = vmatprep.subr.mxu0 %v155
      %1189 = vmatpush1.msra.mxu0 %v154
      %1190 = vmatprep.subr.mxu0 %v152
      %1191 = vmatpush1.msra.mxu0 %v151
      %1192 = vmatprep.subr.mxu0 %v149
      %1193 = vmatpush1.msra.mxu0 %v148
      %1194 = vmatprep.subr.mxu0 %v146
      %1195 = vmatpush1.msra.mxu0 %v145
      %1196 = vmatprep.subr.mxu0 %v143
      %1197 = vmatpush1.msra.mxu0 %v142
      %1198 = vmatprep.subr.mxu0 %v140
      %1199 = vmatpush1.msra.mxu0 %v139
      %1200 = vmatprep.subr.mxu0 %v137
      %1201 = vmatpush1.msra.mxu0 %v136
      %1202 = vmatprep.subr.mxu0 %v134
      %1203 = vmatpush1.msra.mxu0 %v133
      %1204 = vmatprep.subr.mxu0 %v131
      %1205 = vmatpush1.msra.mxu0 %v130
      %1206 = vmatprep.subr.mxu0 %v128
      %1207 = vmatpush1.msra.mxu0 %v127
      %1208 = vmatprep.subr.mxu0 %v125
      %1209 = vmatpush1.msra.mxu0 %v124
      %1210 = vmatprep.subr.mxu0 %v122
      %1211 = vmatpush1.msra.mxu0 %v121
      %1212 = vmatprep.subr.mxu0 %v119
      %1213 = vmatpush1.msra.mxu0 %v118
      %1214 = vmatprep.subr.mxu0 %v116
      %1215 = vmatpush1.msra.mxu0 %v115
      %1216 = vmatprep.subr.mxu0 %v113
      %1217 = vmatpush1.msra.mxu0 %v112
      %1218 = vmatprep.subr.mxu0 0.0
      %1219 = vmatpush2.msra.mxu0 0.0
      %1220 = vmatprep.subr.mxu0 0.0
      %1221 = vmatpush2.msra.mxu0 0.0
      %1222 = vmatprep.subr.mxu0 0.0
      %1223 = vmatpush2.msra.mxu0 0.0
      %1224 = vmatprep.subr.mxu0 0.0
      %1225 = vmatpush2.msra.mxu0 0.0
      %1226 = vmatprep.subr.mxu0 0.0
      %1227 = vmatpush2.msra.mxu0 0.0
      %1228 = vmatprep.subr.mxu0 0.0
      %1229 = vmatpush2.msra.mxu0 0.0
      %1230 = vmatprep.subr.mxu0 0.0
      %1231 = vmatpush2.msra.mxu0 0.0
      %1232 = vmatprep.subr.mxu0 0.0
      %1233 = vmatpush2.msra.mxu0 0.0
      %1234 = vmatprep.subr.mxu0 0.0
      %1235 = vmatpush2.msra.mxu0 0.0
      %1236 = vmatprep.subr.mxu0 0.0
      %1237 = vmatpush2.msra.mxu0 0.0
      %1238 = vmatprep.subr.mxu0 0.0
      %1239 = vmatpush2.msra.mxu0 0.0
      %1240 = vmatprep.subr.mxu0 0.0
      %1241 = vmatpush2.msra.mxu0 0.0
      %1242 = vmatprep.subr.mxu0 0.0
      %1243 = vmatpush2.msra.mxu0 0.0
      %1244 = vmatprep.subr.mxu0 0.0
      %1245 = vmatpush2.msra.mxu0 0.0
      %1246 = vmatprep.subr.mxu0 0.0
      %1247 = vmatpush2.msra.mxu0 0.0
      %1248 = vmatprep.subr.mxu0 0.0
      %1249 = vmatpush2.msra.mxu0 0.0
      %1250 = vmatprep.mubr.f32.mxu0 0.0
      %1251 = vmatmul.mubr.f32.gmra.mxu0 %v1181
      %v1252 = vpop.f32.mrf.mxu0
      %v1253 = vadd.f32 0.0, %v1252
      %v1254 = vpop.f32.mrf.mxu0
      %v1255 = vadd.f32 0.0, %v1254
      %1256 = vdwg.mxu0
      %1257 = vmatprep.subr.mxu0 0.0
      %1258 = vmatpush1.msra.mxu0 %v159
      %1259 = vmatprep.subr.mxu0 0.0
      %1260 = vmatpush1.msra.mxu0 %v156
      %1261 = vmatprep.subr.mxu0 0.0
      %1262 = vmatpush1.msra.mxu0 %v153
      %1263 = vmatprep.subr.mxu0 0.0
      %1264 = vmatpush1.msra.mxu0 %v150
      %1265 = vmatprep.subr.mxu0 0.0
      %1266 = vmatpush1.msra.mxu0 %v147
      %1267 = vmatprep.subr.mxu0 0.0
      %1268 = vmatpush1.msra.mxu0 %v144
      %1269 = vmatprep.subr.mxu0 0.0
      %1270 = vmatpush1.msra.mxu0 %v141
      %1271 = vmatprep.subr.mxu0 0.0
      %1272 = vmatpush1.msra.mxu0 %v138
      %1273 = vmatprep.subr.mxu0 0.0
      %1274 = vmatpush1.msra.mxu0 %v135
      %1275 = vmatprep.subr.mxu0 0.0
      %1276 = vmatpush1.msra.mxu0 %v132
      %1277 = vmatprep.subr.mxu0 0.0
      %1278 = vmatpush1.msra.mxu0 %v129
      %1279 = vmatprep.subr.mxu0 0.0
      %1280 = vmatpush1.msra.mxu0 %v126
      %1281 = vmatprep.subr.mxu0 0.0
      %1282 = vmatpush1.msra.mxu0 %v123
      %1283 = vmatprep.subr.mxu0 0.0
      %1284 = vmatpush1.msra.mxu0 %v120
      %1285 = vmatprep.subr.mxu0 0.0
      %1286 = vmatpush1.msra.mxu0 %v117
      %1287 = vmatprep.subr.mxu0 0.0
      %1288 = vmatpush1.msra.mxu0 %v114
      %1289 = vmatprep.subr.mxu0 0.0
      %1290 = vmatpush2.msra.mxu0 0.0
      %1291 = vmatprep.subr.mxu0 0.0
      %1292 = vmatpush2.msra.mxu0 0.0
      %1293 = vmatprep.subr.mxu0 0.0
      %1294 = vmatpush2.msra.mxu0 0.0
      %1295 = vmatprep.subr.mxu0 0.0
      %1296 = vmatpush2.msra.mxu0 0.0
      %1297 = vmatprep.subr.mxu0 0.0
      %1298 = vmatpush2.msra.mxu0 0.0
      %1299 = vmatprep.subr.mxu0 0.0
      %1300 = vmatpush2.msra.mxu0 0.0
      %1301 = vmatprep.subr.mxu0 0.0
      %1302 = vmatpush2.msra.mxu0 0.0
      %1303 = vmatprep.subr.mxu0 0.0
      %1304 = vmatpush2.msra.mxu0 0.0
      %1305 = vmatprep.subr.mxu0 0.0
      %1306 = vmatpush2.msra.mxu0 0.0
      %1307 = vmatprep.subr.mxu0 0.0
      %1308 = vmatpush2.msra.mxu0 0.0
      %1309 = vmatprep.subr.mxu0 0.0
      %1310 = vmatpush2.msra.mxu0 0.0
      %1311 = vmatprep.subr.mxu0 0.0
      %1312 = vmatpush2.msra.mxu0 0.0
      %1313 = vmatprep.subr.mxu0 0.0
      %1314 = vmatpush2.msra.mxu0 0.0
      %1315 = vmatprep.subr.mxu0 0.0
      %1316 = vmatpush2.msra.mxu0 0.0
      %1317 = vmatprep.subr.mxu0 0.0
      %1318 = vmatpush2.msra.mxu0 0.0
      %1319 = vmatprep.subr.mxu0 0.0
      %1320 = vmatpush2.msra.mxu0 0.0
      %1321 = vmatprep.mubr.f32.mxu0 0.0
      %1322 = vmatmul.mubr.f32.gmra.mxu0 %v1181
      %v1323 = vpop.f32.mrf.mxu0
      %v1324 = vadd.f32 0.0, %v1323
      %v1325 = vpop.f32.mrf.mxu0
      %1326 = vdwg.mxu0
      %v1327 = vadd.f32 %v1183, %v1253
      %v1328 = vxor.u32 %v1327, 2147483648
      %v1329 = vmul.f32 %v1328, 1.442695
      %v1330 = vpow.pop %v1329
      %v1331 = vadd.f32 %v1330, 1.0
      %v1332 = vrcp.pop %v1331
      %v1333 = vmul.f32 1.0, %v1332
      %v1334 = vadd.f32 %v1184, %v1255
      %v1335 = vxor.u32 %v1334, 2147483648
      %v1336 = vmul.f32 %v1335, 1.442695
      %v1337 = vpow.pop %v1336
      %v1338 = vadd.f32 %v1337, 1.0
      %v1339 = vrcp.pop %v1338
      %v1340 = vmul.f32 1.0, %v1339
      %v1341 = vadd.f32 %v1324, %v640
      %v1342 = vmul.f32 %v1333, %v1341
      %v1343 = vadd.f32 %v1185, %v1342
      %v1344 = vtanh.pop %v1343
      %v1345 = vsub.f32 %v1181, %v1344
      %v1346 = vmul.f32 %v1340, %v1345
      %v1347 = vadd.f32 %v1344, %v1346
      %s1348 = sadd.s32 %s476, 4
      %v1349 = vstv %s1348
      %vm1350 = vcmp.lt.s32.totalorder %v1349, %v111
      %v1351 = vsel %vm1350, 1, 0
      %1352 = vset.pattern.permute.xlu0 0
      %1353 = vperm.xlu0 %1352, %v1351
      %v1354 = vpop.permute.xlu0 %1353
      %vm1355 = vcmp.eq.s32.totalorder %v1354, 1
      %v1356 = vsel %vm1355, %v1347, %v1181
      %s1357 = scalar_lea.vmem [#allocation3], 120
      %v1358 = vld [vmem:[%s1357] sm:$0xff]
      %v1359 = vld [vmem:[%s1357 + $0x8] sm:$0xff]
      %v1360 = vld [vmem:[%s1357 + $0x10] sm:$0xff]
      %1361 = vmatprep.subr.mxu0 %v158
      %1362 = vmatpush1.msra.mxu0 %v157
      %1363 = vmatprep.subr.mxu0 %v155
      %1364 = vmatpush1.msra.mxu0 %v154
      %1365 = vmatprep.subr.mxu0 %v152
      %1366 = vmatpush1.msra.mxu0 %v151
      %1367 = vmatprep.subr.mxu0 %v149
      %1368 = vmatpush1.msra.mxu0 %v148
      %1369 = vmatprep.subr.mxu0 %v146
      %1370 = vmatpush1.msra.mxu0 %v145
      %1371 = vmatprep.subr.mxu0 %v143
      %1372 = vmatpush1.msra.mxu0 %v142
      %1373 = vmatprep.subr.mxu0 %v140
      %1374 = vmatpush1.msra.mxu0 %v139
      %1375 = vmatprep.subr.mxu0 %v137
      %1376 = vmatpush1.msra.mxu0 %v136
      %1377 = vmatprep.subr.mxu0 %v134
      %1378 = vmatpush1.msra.mxu0 %v133
      %1379 = vmatprep.subr.mxu0 %v131
      %1380 = vmatpush1.msra.mxu0 %v130
      %1381 = vmatprep.subr.mxu0 %v128
      %1382 = vmatpush1.msra.mxu0 %v127
      %1383 = vmatprep.subr.mxu0 %v125
      %1384 = vmatpush1.msra.mxu0 %v124
      %1385 = vmatprep.subr.mxu0 %v122
      %1386 = vmatpush1.msra.mxu0 %v121
      %1387 = vmatprep.subr.mxu0 %v119
      %1388 = vmatpush1.msra.mxu0 %v118
      %1389 = vmatprep.subr.mxu0 %v116
      %1390 = vmatpush1.msra.mxu0 %v115
      %1391 = vmatprep.subr.mxu0 %v113
      %1392 = vmatpush1.msra.mxu0 %v112
      %1393 = vmatprep.subr.mxu0 0.0
      %1394 = vmatpush2.msra.mxu0 0.0
      %1395 = vmatprep.subr.mxu0 0.0
      %1396 = vmatpush2.msra.mxu0 0.0
      %1397 = vmatprep.subr.mxu0 0.0
      %1398 = vmatpush2.msra.mxu0 0.0
      %1399 = vmatprep.subr.mxu0 0.0
      %1400 = vmatpush2.msra.mxu0 0.0
      %1401 = vmatprep.subr.mxu0 0.0
      %1402 = vmatpush2.msra.mxu0 0.0
      %1403 = vmatprep.subr.mxu0 0.0
      %1404 = vmatpush2.msra.mxu0 0.0
      %1405 = vmatprep.subr.mxu0 0.0
      %1406 = vmatpush2.msra.mxu0 0.0
      %1407 = vmatprep.subr.mxu0 0.0
      %1408 = vmatpush2.msra.mxu0 0.0
      %1409 = vmatprep.subr.mxu0 0.0
      %1410 = vmatpush2.msra.mxu0 0.0
      %1411 = vmatprep.subr.mxu0 0.0
      %1412 = vmatpush2.msra.mxu0 0.0
      %1413 = vmatprep.subr.mxu0 0.0
      %1414 = vmatpush2.msra.mxu0 0.0
      %1415 = vmatprep.subr.mxu0 0.0
      %1416 = vmatpush2.msra.mxu0 0.0
      %1417 = vmatprep.subr.mxu0 0.0
      %1418 = vmatpush2.msra.mxu0 0.0
      %1419 = vmatprep.subr.mxu0 0.0
      %1420 = vmatpush2.msra.mxu0 0.0
      %1421 = vmatprep.subr.mxu0 0.0
      %1422 = vmatpush2.msra.mxu0 0.0
      %1423 = vmatprep.subr.mxu0 0.0
      %1424 = vmatpush2.msra.mxu0 0.0
      %1425 = vmatprep.mubr.f32.mxu0 0.0
      %1426 = vmatmul.mubr.f32.gmra.mxu0 %v1356
      %v1427 = vpop.f32.mrf.mxu0
      %v1428 = vadd.f32 0.0, %v1427
      %v1429 = vpop.f32.mrf.mxu0
      %v1430 = vadd.f32 0.0, %v1429
      %1431 = vdwg.mxu0
      %1432 = vmatprep.subr.mxu0 0.0
      %1433 = vmatpush1.msra.mxu0 %v159
      %1434 = vmatprep.subr.mxu0 0.0
      %1435 = vmatpush1.msra.mxu0 %v156
      %1436 = vmatprep.subr.mxu0 0.0
      %1437 = vmatpush1.msra.mxu0 %v153
      %1438 = vmatprep.subr.mxu0 0.0
      %1439 = vmatpush1.msra.mxu0 %v150
      %1440 = vmatprep.subr.mxu0 0.0
      %1441 = vmatpush1.msra.mxu0 %v147
      %1442 = vmatprep.subr.mxu0 0.0
      %1443 = vmatpush1.msra.mxu0 %v144
      %1444 = vmatprep.subr.mxu0 0.0
      %1445 = vmatpush1.msra.mxu0 %v141
      %1446 = vmatprep.subr.mxu0 0.0
      %1447 = vmatpush1.msra.mxu0 %v138
      %1448 = vmatprep.subr.mxu0 0.0
      %1449 = vmatpush1.msra.mxu0 %v135
      %1450 = vmatprep.subr.mxu0 0.0
      %1451 = vmatpush1.msra.mxu0 %v132
      %1452 = vmatprep.subr.mxu0 0.0
      %1453 = vmatpush1.msra.mxu0 %v129
      %1454 = vmatprep.subr.mxu0 0.0
      %1455 = vmatpush1.msra.mxu0 %v126
      %1456 = vmatprep.subr.mxu0 0.0
      %1457 = vmatpush1.msra.mxu0 %v123
      %1458 = vmatprep.subr.mxu0 0.0
      %1459 = vmatpush1.msra.mxu0 %v120
      %1460 = vmatprep.subr.mxu0 0.0
      %1461 = vmatpush1.msra.mxu0 %v117
      %1462 = vmatprep.subr.mxu0 0.0
      %1463 = vmatpush1.msra.mxu0 %v114
      %1464 = vmatprep.subr.mxu0 0.0
      %1465 = vmatpush2.msra.mxu0 0.0
      %1466 = vmatprep.subr.mxu0 0.0
      %1467 = vmatpush2.msra.mxu0 0.0
      %1468 = vmatprep.subr.mxu0 0.0
      %1469 = vmatpush2.msra.mxu0 0.0
      %1470 = vmatprep.subr.mxu0 0.0
      %1471 = vmatpush2.msra.mxu0 0.0
      %1472 = vmatprep.subr.mxu0 0.0
      %1473 = vmatpush2.msra.mxu0 0.0
      %1474 = vmatprep.subr.mxu0 0.0
      %1475 = vmatpush2.msra.mxu0 0.0
      %1476 = vmatprep.subr.mxu0 0.0
      %1477 = vmatpush2.msra.mxu0 0.0
      %1478 = vmatprep.subr.mxu0 0.0
      %1479 = vmatpush2.msra.mxu0 0.0
      %1480 = vmatprep.subr.mxu0 0.0
      %1481 = vmatpush2.msra.mxu0 0.0
      %1482 = vmatprep.subr.mxu0 0.0
      %1483 = vmatpush2.msra.mxu0 0.0
      %1484 = vmatprep.subr.mxu0 0.0
      %1485 = vmatpush2.msra.mxu0 0.0
      %1486 = vmatprep.subr.mxu0 0.0
      %1487 = vmatpush2.msra.mxu0 0.0
      %1488 = vmatprep.subr.mxu0 0.0
      %1489 = vmatpush2.msra.mxu0 0.0
      %1490 = vmatprep.subr.mxu0 0.0
      %1491 = vmatpush2.msra.mxu0 0.0
      %1492 = vmatprep.subr.mxu0 0.0
      %1493 = vmatpush2.msra.mxu0 0.0
      %1494 = vmatprep.subr.mxu0 0.0
      %1495 = vmatpush2.msra.mxu0 0.0
      %1496 = vmatprep.mubr.f32.mxu0 0.0
      %1497 = vmatmul.mubr.f32.gmra.mxu0 %v1356
      %v1498 = vpop.f32.mrf.mxu0
      %v1499 = vadd.f32 0.0, %v1498
      %v1500 = vpop.f32.mrf.mxu0
      %1501 = vdwg.mxu0
      %v1502 = vadd.f32 %v1358, %v1428
      %v1503 = vxor.u32 %v1502, 2147483648
      %v1504 = vmul.f32 %v1503, 1.442695
      %v1505 = vpow.pop %v1504
      %v1506 = vadd.f32 %v1505, 1.0
      %v1507 = vrcp.pop %v1506
      %v1508 = vmul.f32 1.0, %v1507
      %v1509 = vadd.f32 %v1359, %v1430
      %v1510 = vxor.u32 %v1509, 2147483648
      %v1511 = vmul.f32 %v1510, 1.442695
      %v1512 = vpow.pop %v1511
      %v1513 = vadd.f32 %v1512, 1.0
      %v1514 = vrcp.pop %v1513
      %v1515 = vmul.f32 1.0, %v1514
      %v1516 = vadd.f32 %v1499, %v640
      %v1517 = vmul.f32 %v1508, %v1516
      %v1518 = vadd.f32 %v1360, %v1517
      %v1519 = vtanh.pop %v1518
      %v1520 = vsub.f32 %v1356, %v1519
      %v1521 = vmul.f32 %v1515, %v1520
      %v1522 = vadd.f32 %v1519, %v1521
      %s1523 = sadd.s32 %s476, 5
      %v1524 = vstv %s1523
      %vm1525 = vcmp.lt.s32.totalorder %v1524, %v111
      %v1526 = vsel %vm1525, 1, 0
      %1527 = vset.pattern.permute.xlu0 0
      %1528 = vperm.xlu0 %1527, %v1526
      %v1529 = vpop.permute.xlu0 %1528
      %vm1530 = vcmp.eq.s32.totalorder %v1529, 1
      %v1531 = vsel %vm1530, %v1522, %v1356
      %s1532 = scalar_lea.vmem [#allocation3], 144
      %v1533 = vld [vmem:[%s1532] sm:$0xff]
      %v1534 = vld [vmem:[%s1532 + $0x8] sm:$0xff]
      %v1535 = vld [vmem:[%s1532 + $0x10] sm:$0xff]
      %1536 = vmatprep.subr.mxu0 %v158
      %1537 = vmatpush1.msra.mxu0 %v157
      %1538 = vmatprep.subr.mxu0 %v155
      %1539 = vmatpush1.msra.mxu0 %v154
      %1540 = vmatprep.subr.mxu0 %v152
      %1541 = vmatpush1.msra.mxu0 %v151
      %1542 = vmatprep.subr.mxu0 %v149
      %1543 = vmatpush1.msra.mxu0 %v148
      %1544 = vmatprep.subr.mxu0 %v146
      %1545 = vmatpush1.msra.mxu0 %v145
      %1546 = vmatprep.subr.mxu0 %v143
      %1547 = vmatpush1.msra.mxu0 %v142
      %1548 = vmatprep.subr.mxu0 %v140
      %1549 = vmatpush1.msra.mxu0 %v139
      %1550 = vmatprep.subr.mxu0 %v137
      %1551 = vmatpush1.msra.mxu0 %v136
      %1552 = vmatprep.subr.mxu0 %v134
      %1553 = vmatpush1.msra.mxu0 %v133
      %1554 = vmatprep.subr.mxu0 %v131
      %1555 = vmatpush1.msra.mxu0 %v130
      %1556 = vmatprep.subr.mxu0 %v128
      %1557 = vmatpush1.msra.mxu0 %v127
      %1558 = vmatprep.subr.mxu0 %v125
      %1559 = vmatpush1.msra.mxu0 %v124
      %1560 = vmatprep.subr.mxu0 %v122
      %1561 = vmatpush1.msra.mxu0 %v121
      %1562 = vmatprep.subr.mxu0 %v119
      %1563 = vmatpush1.msra.mxu0 %v118
      %1564 = vmatprep.subr.mxu0 %v116
      %1565 = vmatpush1.msra.mxu0 %v115
      %1566 = vmatprep.subr.mxu0 %v113
      %1567 = vmatpush1.msra.mxu0 %v112
      %1568 = vmatprep.subr.mxu0 0.0
      %1569 = vmatpush2.msra.mxu0 0.0
      %1570 = vmatprep.subr.mxu0 0.0
      %1571 = vmatpush2.msra.mxu0 0.0
      %1572 = vmatprep.subr.mxu0 0.0
      %1573 = vmatpush2.msra.mxu0 0.0
      %1574 = vmatprep.subr.mxu0 0.0
      %1575 = vmatpush2.msra.mxu0 0.0
      %1576 = vmatprep.subr.mxu0 0.0
      %1577 = vmatpush2.msra.mxu0 0.0
      %1578 = vmatprep.subr.mxu0 0.0
      %1579 = vmatpush2.msra.mxu0 0.0
      %1580 = vmatprep.subr.mxu0 0.0
      %1581 = vmatpush2.msra.mxu0 0.0
      %1582 = vmatprep.subr.mxu0 0.0
      %1583 = vmatpush2.msra.mxu0 0.0
      %1584 = vmatprep.subr.mxu0 0.0
      %1585 = vmatpush2.msra.mxu0 0.0
      %1586 = vmatprep.subr.mxu0 0.0
      %1587 = vmatpush2.msra.mxu0 0.0
      %1588 = vmatprep.subr.mxu0 0.0
      %1589 = vmatpush2.msra.mxu0 0.0
      %1590 = vmatprep.subr.mxu0 0.0
      %1591 = vmatpush2.msra.mxu0 0.0
      %1592 = vmatprep.subr.mxu0 0.0
      %1593 = vmatpush2.msra.mxu0 0.0
      %1594 = vmatprep.subr.mxu0 0.0
      %1595 = vmatpush2.msra.mxu0 0.0
      %1596 = vmatprep.subr.mxu0 0.0
      %1597 = vmatpush2.msra.mxu0 0.0
      %1598 = vmatprep.subr.mxu0 0.0
      %1599 = vmatpush2.msra.mxu0 0.0
      %1600 = vmatprep.mubr.f32.mxu0 0.0
      %1601 = vmatmul.mubr.f32.gmra.mxu0 %v1531
      %v1602 = vpop.f32.mrf.mxu0
      %v1603 = vadd.f32 0.0, %v1602
      %v1604 = vpop.f32.mrf.mxu0
      %v1605 = vadd.f32 0.0, %v1604
      %1606 = vdwg.mxu0
      %1607 = vmatprep.subr.mxu0 0.0
      %1608 = vmatpush1.msra.mxu0 %v159
      %1609 = vmatprep.subr.mxu0 0.0
      %1610 = vmatpush1.msra.mxu0 %v156
      %1611 = vmatprep.subr.mxu0 0.0
      %1612 = vmatpush1.msra.mxu0 %v153
      %1613 = vmatprep.subr.mxu0 0.0
      %1614 = vmatpush1.msra.mxu0 %v150
      %1615 = vmatprep.subr.mxu0 0.0
      %1616 = vmatpush1.msra.mxu0 %v147
      %1617 = vmatprep.subr.mxu0 0.0
      %1618 = vmatpush1.msra.mxu0 %v144
      %1619 = vmatprep.subr.mxu0 0.0
      %1620 = vmatpush1.msra.mxu0 %v141
      %1621 = vmatprep.subr.mxu0 0.0
      %1622 = vmatpush1.msra.mxu0 %v138
      %1623 = vmatprep.subr.mxu0 0.0
      %1624 = vmatpush1.msra.mxu0 %v135
      %1625 = vmatprep.subr.mxu0 0.0
      %1626 = vmatpush1.msra.mxu0 %v132
      %1627 = vmatprep.subr.mxu0 0.0
      %1628 = vmatpush1.msra.mxu0 %v129
      %1629 = vmatprep.subr.mxu0 0.0
      %1630 = vmatpush1.msra.mxu0 %v126
      %1631 = vmatprep.subr.mxu0 0.0
      %1632 = vmatpush1.msra.mxu0 %v123
      %1633 = vmatprep.subr.mxu0 0.0
      %1634 = vmatpush1.msra.mxu0 %v120
      %1635 = vmatprep.subr.mxu0 0.0
      %1636 = vmatpush1.msra.mxu0 %v117
      %1637 = vmatprep.subr.mxu0 0.0
      %1638 = vmatpush1.msra.mxu0 %v114
      %1639 = vmatprep.subr.mxu0 0.0
      %1640 = vmatpush2.msra.mxu0 0.0
      %1641 = vmatprep.subr.mxu0 0.0
      %1642 = vmatpush2.msra.mxu0 0.0
      %1643 = vmatprep.subr.mxu0 0.0
      %1644 = vmatpush2.msra.mxu0 0.0
      %1645 = vmatprep.subr.mxu0 0.0
      %1646 = vmatpush2.msra.mxu0 0.0
      %1647 = vmatprep.subr.mxu0 0.0
      %1648 = vmatpush2.msra.mxu0 0.0
      %1649 = vmatprep.subr.mxu0 0.0
      %1650 = vmatpush2.msra.mxu0 0.0
      %1651 = vmatprep.subr.mxu0 0.0
      %1652 = vmatpush2.msra.mxu0 0.0
      %1653 = vmatprep.subr.mxu0 0.0
      %1654 = vmatpush2.msra.mxu0 0.0
      %1655 = vmatprep.subr.mxu0 0.0
      %1656 = vmatpush2.msra.mxu0 0.0
      %1657 = vmatprep.subr.mxu0 0.0
      %1658 = vmatpush2.msra.mxu0 0.0
      %1659 = vmatprep.subr.mxu0 0.0
      %1660 = vmatpush2.msra.mxu0 0.0
      %1661 = vmatprep.subr.mxu0 0.0
      %1662 = vmatpush2.msra.mxu0 0.0
      %1663 = vmatprep.subr.mxu0 0.0
      %1664 = vmatpush2.msra.mxu0 0.0
      %1665 = vmatprep.subr.mxu0 0.0
      %1666 = vmatpush2.msra.mxu0 0.0
      %1667 = vmatprep.subr.mxu0 0.0
      %1668 = vmatpush2.msra.mxu0 0.0
      %1669 = vmatprep.subr.mxu0 0.0
      %1670 = vmatpush2.msra.mxu0 0.0
      %1671 = vmatprep.mubr.f32.mxu0 0.0
      %1672 = vmatmul.mubr.f32.gmra.mxu0 %v1531
      %v1673 = vpop.f32.mrf.mxu0
      %v1674 = vadd.f32 0.0, %v1673
      %v1675 = vpop.f32.mrf.mxu0
      %1676 = vdwg.mxu0
      %v1677 = vadd.f32 %v1533, %v1603
      %v1678 = vxor.u32 %v1677, 2147483648
      %v1679 = vmul.f32 %v1678, 1.442695
      %v1680 = vpow.pop %v1679
      %v1681 = vadd.f32 %v1680, 1.0
      %v1682 = vrcp.pop %v1681
      %v1683 = vmul.f32 1.0, %v1682
      %v1684 = vadd.f32 %v1534, %v1605
      %v1685 = vxor.u32 %v1684, 2147483648
      %v1686 = vmul.f32 %v1685, 1.442695
      %v1687 = vpow.pop %v1686
      %v1688 = vadd.f32 %v1687, 1.0
      %v1689 = vrcp.pop %v1688
      %v1690 = vmul.f32 1.0, %v1689
      %v1691 = vadd.f32 %v1674, %v640
      %v1692 = vmul.f32 %v1683, %v1691
      %v1693 = vadd.f32 %v1535, %v1692
      %v1694 = vtanh.pop %v1693
      %v1695 = vsub.f32 %v1531, %v1694
      %v1696 = vmul.f32 %v1690, %v1695
      %v1697 = vadd.f32 %v1694, %v1696
      %s1698 = sadd.s32 %s476, 6
      %v1699 = vstv %s1698
      %vm1700 = vcmp.lt.s32.totalorder %v1699, %v111
      %v1701 = vsel %vm1700, 1, 0
      %1702 = vset.pattern.permute.xlu0 0
      %1703 = vperm.xlu0 %1702, %v1701
      %v1704 = vpop.permute.xlu0 %1703
      %vm1705 = vcmp.eq.s32.totalorder %v1704, 1
      %v1706 = vsel %vm1705, %v1697, %v1531
      %s1707 = scalar_lea.vmem [#allocation3], 168
      %v1708 = vld [vmem:[%s1707] sm:$0xff]
      %v1709 = vld [vmem:[%s1707 + $0x8] sm:$0xff]
      %v1710 = vld [vmem:[%s1707 + $0x10] sm:$0xff]
      %1711 = vmatprep.subr.mxu0 %v158
      %1712 = vmatpush1.msra.mxu0 %v157
      %1713 = vmatprep.subr.mxu0 %v155
      %1714 = vmatpush1.msra.mxu0 %v154
      %1715 = vmatprep.subr.mxu0 %v152
      %1716 = vmatpush1.msra.mxu0 %v151
      %1717 = vmatprep.subr.mxu0 %v149
      %1718 = vmatpush1.msra.mxu0 %v148
      %1719 = vmatprep.subr.mxu0 %v146
      %1720 = vmatpush1.msra.mxu0 %v145
      %1721 = vmatprep.subr.mxu0 %v143
      %1722 = vmatpush1.msra.mxu0 %v142
      %1723 = vmatprep.subr.mxu0 %v140
      %1724 = vmatpush1.msra.mxu0 %v139
      %1725 = vmatprep.subr.mxu0 %v137
      %1726 = vmatpush1.msra.mxu0 %v136
      %1727 = vmatprep.subr.mxu0 %v134
      %1728 = vmatpush1.msra.mxu0 %v133
      %1729 = vmatprep.subr.mxu0 %v131
      %1730 = vmatpush1.msra.mxu0 %v130
      %1731 = vmatprep.subr.mxu0 %v128
      %1732 = vmatpush1.msra.mxu0 %v127
      %1733 = vmatprep.subr.mxu0 %v125
      %1734 = vmatpush1.msra.mxu0 %v124
      %1735 = vmatprep.subr.mxu0 %v122
      %1736 = vmatpush1.msra.mxu0 %v121
      %1737 = vmatprep.subr.mxu0 %v119
      %1738 = vmatpush1.msra.mxu0 %v118
      %1739 = vmatprep.subr.mxu0 %v116
      %1740 = vmatpush1.msra.mxu0 %v115
      %1741 = vmatprep.subr.mxu0 %v113
      %1742 = vmatpush1.msra.mxu0 %v112
      %1743 = vmatprep.subr.mxu0 0.0
      %1744 = vmatpush2.msra.mxu0 0.0
      %1745 = vmatprep.subr.mxu0 0.0
      %1746 = vmatpush2.msra.mxu0 0.0
      %1747 = vmatprep.subr.mxu0 0.0
      %1748 = vmatpush2.msra.mxu0 0.0
      %1749 = vmatprep.subr.mxu0 0.0
      %1750 = vmatpush2.msra.mxu0 0.0
      %1751 = vmatprep.subr.mxu0 0.0
      %1752 = vmatpush2.msra.mxu0 0.0
      %1753 = vmatprep.subr.mxu0 0.0
      %1754 = vmatpush2.msra.mxu0 0.0
      %1755 = vmatprep.subr.mxu0 0.0
      %1756 = vmatpush2.msra.mxu0 0.0
      %1757 = vmatprep.subr.mxu0 0.0
      %1758 = vmatpush2.msra.mxu0 0.0
      %1759 = vmatprep.subr.mxu0 0.0
      %1760 = vmatpush2.msra.mxu0 0.0
      %1761 = vmatprep.subr.mxu0 0.0
      %1762 = vmatpush2.msra.mxu0 0.0
      %1763 = vmatprep.subr.mxu0 0.0
      %1764 = vmatpush2.msra.mxu0 0.0
      %1765 = vmatprep.subr.mxu0 0.0
      %1766 = vmatpush2.msra.mxu0 0.0
      %1767 = vmatprep.subr.mxu0 0.0
      %1768 = vmatpush2.msra.mxu0 0.0
      %1769 = vmatprep.subr.mxu0 0.0
      %1770 = vmatpush2.msra.mxu0 0.0
      %1771 = vmatprep.subr.mxu0 0.0
      %1772 = vmatpush2.msra.mxu0 0.0
      %1773 = vmatprep.subr.mxu0 0.0
      %1774 = vmatpush2.msra.mxu0 0.0
      %1775 = vmatprep.mubr.f32.mxu0 0.0
      %1776 = vmatmul.mubr.f32.gmra.mxu0 %v1706
      %v1777 = vpop.f32.mrf.mxu0
      %v1778 = vadd.f32 0.0, %v1777
      %v1779 = vpop.f32.mrf.mxu0
      %v1780 = vadd.f32 0.0, %v1779
      %1781 = vdwg.mxu0
      %1782 = vmatprep.subr.mxu0 0.0
      %1783 = vmatpush1.msra.mxu0 %v159
      %1784 = vmatprep.subr.mxu0 0.0
      %1785 = vmatpush1.msra.mxu0 %v156
      %1786 = vmatprep.subr.mxu0 0.0
      %1787 = vmatpush1.msra.mxu0 %v153
      %1788 = vmatprep.subr.mxu0 0.0
      %1789 = vmatpush1.msra.mxu0 %v150
      %1790 = vmatprep.subr.mxu0 0.0
      %1791 = vmatpush1.msra.mxu0 %v147
      %1792 = vmatprep.subr.mxu0 0.0
      %1793 = vmatpush1.msra.mxu0 %v144
      %1794 = vmatprep.subr.mxu0 0.0
      %1795 = vmatpush1.msra.mxu0 %v141
      %1796 = vmatprep.subr.mxu0 0.0
      %1797 = vmatpush1.msra.mxu0 %v138
      %1798 = vmatprep.subr.mxu0 0.0
      %1799 = vmatpush1.msra.mxu0 %v135
      %1800 = vmatprep.subr.mxu0 0.0
      %1801 = vmatpush1.msra.mxu0 %v132
      %1802 = vmatprep.subr.mxu0 0.0
      %1803 = vmatpush1.msra.mxu0 %v129
      %1804 = vmatprep.subr.mxu0 0.0
      %1805 = vmatpush1.msra.mxu0 %v126
      %1806 = vmatprep.subr.mxu0 0.0
      %1807 = vmatpush1.msra.mxu0 %v123
      %1808 = vmatprep.subr.mxu0 0.0
      %1809 = vmatpush1.msra.mxu0 %v120
      %1810 = vmatprep.subr.mxu0 0.0
      %1811 = vmatpush1.msra.mxu0 %v117
      %1812 = vmatprep.subr.mxu0 0.0
      %1813 = vmatpush1.msra.mxu0 %v114
      %1814 = vmatprep.subr.mxu0 0.0
      %1815 = vmatpush2.msra.mxu0 0.0
      %1816 = vmatprep.subr.mxu0 0.0
      %1817 = vmatpush2.msra.mxu0 0.0
      %1818 = vmatprep.subr.mxu0 0.0
      %1819 = vmatpush2.msra.mxu0 0.0
      %1820 = vmatprep.subr.mxu0 0.0
      %1821 = vmatpush2.msra.mxu0 0.0
      %1822 = vmatprep.subr.mxu0 0.0
      %1823 = vmatpush2.msra.mxu0 0.0
      %1824 = vmatprep.subr.mxu0 0.0
      %1825 = vmatpush2.msra.mxu0 0.0
      %1826 = vmatprep.subr.mxu0 0.0
      %1827 = vmatpush2.msra.mxu0 0.0
      %1828 = vmatprep.subr.mxu0 0.0
      %1829 = vmatpush2.msra.mxu0 0.0
      %1830 = vmatprep.subr.mxu0 0.0
      %1831 = vmatpush2.msra.mxu0 0.0
      %1832 = vmatprep.subr.mxu0 0.0
      %1833 = vmatpush2.msra.mxu0 0.0
      %1834 = vmatprep.subr.mxu0 0.0
      %1835 = vmatpush2.msra.mxu0 0.0
      %1836 = vmatprep.subr.mxu0 0.0
      %1837 = vmatpush2.msra.mxu0 0.0
      %1838 = vmatprep.subr.mxu0 0.0
      %1839 = vmatpush2.msra.mxu0 0.0
      %1840 = vmatprep.subr.mxu0 0.0
      %1841 = vmatpush2.msra.mxu0 0.0
      %1842 = vmatprep.subr.mxu0 0.0
      %1843 = vmatpush2.msra.mxu0 0.0
      %1844 = vmatprep.subr.mxu0 0.0
      %1845 = vmatpush2.msra.mxu0 0.0
      %1846 = vmatprep.mubr.f32.mxu0 0.0
      %1847 = vmatmul.mubr.f32.gmra.mxu0 %v1706
      %v1848 = vpop.f32.mrf.mxu0
      %v1849 = vadd.f32 0.0, %v1848
      %v1850 = vpop.f32.mrf.mxu0
      %1851 = vdwg.mxu0
      %v1852 = vadd.f32 %v1708, %v1778
      %v1853 = vxor.u32 %v1852, 2147483648
      %v1854 = vmul.f32 %v1853, 1.442695
      %v1855 = vpow.pop %v1854
      %v1856 = vadd.f32 %v1855, 1.0
      %v1857 = vrcp.pop %v1856
      %v1858 = vmul.f32 1.0, %v1857
      %v1859 = vadd.f32 %v1709, %v1780
      %v1860 = vxor.u32 %v1859, 2147483648
      %v1861 = vmul.f32 %v1860, 1.442695
      %v1862 = vpow.pop %v1861
      %v1863 = vadd.f32 %v1862, 1.0
      %v1864 = vrcp.pop %v1863
      %v1865 = vmul.f32 1.0, %v1864
      %v1866 = vadd.f32 %v1849, %v640
      %v1867 = vmul.f32 %v1858, %v1866
      %v1868 = vadd.f32 %v1710, %v1867
      %v1869 = vtanh.pop %v1868
      %v1870 = vsub.f32 %v1706, %v1869
      %v1871 = vmul.f32 %v1865, %v1870
      %v1872 = vadd.f32 %v1869, %v1871
      %s1873 = sadd.s32 %s476, 7
      %v1874 = vstv %s1873
      %vm1875 = vcmp.lt.s32.totalorder %v1874, %v111
      %v1876 = vsel %vm1875, 1, 0
      %1877 = vset.pattern.permute.xlu0 0
      %1878 = vperm.xlu0 %1877, %v1876
      %v1879 = vpop.permute.xlu0 %1878
      %vm1880 = vcmp.eq.s32.totalorder %v1879, 1
      %v1881 = vsel %vm1880, %v1872, %v1706
      %1882 = vst [vmem:[#allocation2] sm:$0xff] %v1881
    $region57: #{tpu_custom_call.1} parent=1 // pred_fallthru
      _
    // Predicated region
    $region58: #{tpu_custom_call.1} parent=1 // pred_check
      %p1883 = pneg %p101
    $region59: #{tpu_custom_call.1} parent=1 // pred_check_branch
      %1885 = sbr.rel (%p1883) target = $region61
    $region60: #{tpu_custom_call.1} parent=1 // pred_region
      %v1886 = vld [vmem:[#allocation2] sm:$0xff]
      %v1887 = vld [vmem:[#allocation13] sm:$0xff]
      %v1888 = vld [vmem:[#allocation13 + $0x8] sm:$0xff]
      %v1889 = vld [vmem:[#allocation13 + $0x10] sm:$0xff]
      %v1890 = vld [vmem:[#allocation13 + $0x18] sm:$0xff]
      %v1891 = vld [vmem:[#allocation13 + $0x20] sm:$0xff]
      %v1892 = vld [vmem:[#allocation13 + $0x28] sm:$0xff]
      %v1893 = vld [vmem:[#allocation13 + $0x30] sm:$0xff]
      %v1894 = vld [vmem:[#allocation13 + $0x38] sm:$0xff]
      %v1895 = vld [vmem:[#allocation13 + $0x40] sm:$0xff]
      %v1896 = vld [vmem:[#allocation13 + $0x48] sm:$0xff]
      %v1897 = vld [vmem:[#allocation13 + $0x50] sm:$0xff]
      %v1898 = vld [vmem:[#allocation13 + $0x58] sm:$0xff]
      %v1899 = vld [vmem:[#allocation13 + $0x60] sm:$0xff]
      %v1900 = vld [vmem:[#allocation13 + $0x68] sm:$0xff]
      %v1901 = vld [vmem:[#allocation13 + $0x70] sm:$0xff]
      %v1902 = vld [vmem:[#allocation13 + $0x78] sm:$0xff]
      %v1903 = vld [vmem:[%s9] sm:$0x1]
      %v1905 = vlaneseq
      %v1906 = vshrl.u32 %v1905, 7
      %v1907 = vsub.s32 0, %v1906
      %v1908 = vrot.slane %v1903, %v1907
      %1910 = vmatprep.subr.mxu0 0.0
      %1911 = vmatpush1.msra.mxu0 %v1902
      %1912 = vmatprep.subr.mxu0 0.0
      %1913 = vmatpush1.msra.mxu0 %v1901
      %1914 = vmatprep.subr.mxu0 0.0
      %1915 = vmatpush1.msra.mxu0 %v1900
      %1916 = vmatprep.subr.mxu0 0.0
      %1917 = vmatpush1.msra.mxu0 %v1899
      %1918 = vmatprep.subr.mxu0 0.0
      %1919 = vmatpush1.msra.mxu0 %v1898
      %1920 = vmatprep.subr.mxu0 0.0
      %1921 = vmatpush1.msra.mxu0 %v1897
      %1922 = vmatprep.subr.mxu0 0.0
      %1923 = vmatpush1.msra.mxu0 %v1896
      %1924 = vmatprep.subr.mxu0 0.0
      %1925 = vmatpush1.msra.mxu0 %v1895
      %1926 = vmatprep.subr.mxu0 0.0
      %1927 = vmatpush1.msra.mxu0 %v1894
      %1928 = vmatprep.subr.mxu0 0.0
      %1929 = vmatpush1.msra.mxu0 %v1893
      %1930 = vmatprep.subr.mxu0 0.0
      %1931 = vmatpush1.msra.mxu0 %v1892
      %1932 = vmatprep.subr.mxu0 0.0
      %1933 = vmatpush1.msra.mxu0 %v1891
      %1934 = vmatprep.subr.mxu0 0.0
      %1935 = vmatpush1.msra.mxu0 %v1890
      %1936 = vmatprep.subr.mxu0 0.0
      %1937 = vmatpush1.msra.mxu0 %v1889
      %1938 = vmatprep.subr.mxu0 0.0
      %1939 = vmatpush1.msra.mxu0 %v1888
      %1940 = vmatprep.subr.mxu0 0.0
      %1941 = vmatpush1.msra.mxu0 %v1887
      %1942 = vmatprep.subr.mxu0 0.0
      %1943 = vmatpush2.msra.mxu0 0.0
      %1944 = vmatprep.subr.mxu0 0.0
      %1945 = vmatpush2.msra.mxu0 0.0
      %1946 = vmatprep.subr.mxu0 0.0
      %1947 = vmatpush2.msra.mxu0 0.0
      %1948 = vmatprep.subr.mxu0 0.0
      %1949 = vmatpush2.msra.mxu0 0.0
      %1950 = vmatprep.subr.mxu0 0.0
      %1951 = vmatpush2.msra.mxu0 0.0
      %1952 = vmatprep.subr.mxu0 0.0
      %1953 = vmatpush2.msra.mxu0 0.0
      %1954 = vmatprep.subr.mxu0 0.0
      %1955 = vmatpush2.msra.mxu0 0.0
      %1956 = vmatprep.subr.mxu0 0.0
      %1957 = vmatpush2.msra.mxu0 0.0
      %1958 = vmatprep.subr.mxu0 0.0
      %1959 = vmatpush2.msra.mxu0 0.0
      %1960 = vmatprep.subr.mxu0 0.0
      %1961 = vmatpush2.msra.mxu0 0.0
      %1962 = vmatprep.subr.mxu0 0.0
      %1963 = vmatpush2.msra.mxu0 0.0
      %1964 = vmatprep.subr.mxu0 0.0
      %1965 = vmatpush2.msra.mxu0 0.0
      %1966 = vmatprep.subr.mxu0 0.0
      %1967 = vmatpush2.msra.mxu0 0.0
      %1968 = vmatprep.subr.mxu0 0.0
      %1969 = vmatpush2.msra.mxu0 0.0
      %1970 = vmatprep.subr.mxu0 0.0
      %1971 = vmatpush2.msra.mxu0 0.0
      %1972 = vmatprep.subr.mxu0 0.0
      %1973 = vmatpush2.msra.mxu0 0.0
      %1974 = vmatprep.mubr.f32.mxu0 0.0
      %1975 = vmatmul.mubr.f32.gmra.mxu0 %v1886
      %v1976 = vpop.f32.mrf.mxu0
      %v1977 = vadd.f32 %v1908, %v1976
      %v1978 = vpop.f32.mrf.mxu0
      %1979 = vdwg.mxu0
      %v1980 = vxor.u32 %v1977, 2147483648
      %v1981 = vmul.f32 %v1980, 1.442695
      %v1982 = vpow.pop %v1981
      %v1983 = vadd.f32 %v1982, 1.0
      %v1984 = vrcp.pop %v1983
      %v1985 = vmul.f32 1.0, %v1984
      %1986 = vst [vmem:[#allocation15] sm:$0xff] %v1985
    $region61: #{tpu_custom_call.1} parent=1 // pred_fallthru
      _
    // Predicated region
    $region62: #{tpu_custom_call.1} parent=1 // pred_check
      _
    $region63: #{tpu_custom_call.1} parent=1 // pred_check_branch
      %1988 = sbr.rel (0) target = $region65
    $region64: #{tpu_custom_call.1} parent=1 // pred_region
      %s1990 = ssub.s32 128, 128
      %1991 = vsyncadd [#allocation9], %s1990
      %s1993 = sshll.u32 [#allocation15], 4
      %s1994 = int_to_ptr.vmem [resolvable:$true] %s1993
      %1996 = dma.vmem_to_hbm [thread:$0]  %s1994, 128, %s10, [#allocation9]
    $region65: #{tpu_custom_call.1} parent=1 // pred_fallthru
      _
    // Predicated region
    $region66: #{tpu_custom_call.1} parent=1 // pred_check
      _
    $region67: #{tpu_custom_call.1} parent=1 // pred_check_branch
      %1998 = sbr.rel (0) target = $region69
    $region68: #{tpu_custom_call.1} parent=1 // pred_region
      %1999 = dma.done [#allocation9], 128
    $region69: #{tpu_custom_call.1} parent=1 // pred_fallthru
      _
    %2000 = vsyncpa [#allocation8], 1
    %2001 = vsyncpa [#allocation11], 1
    %2002 = vsyncpa [#allocation14], 1
    %2003 = vsyncpa [#allocation9], 1

</llo_original>
